<compile_context>
chip_gen: v7x
topology: tpu7x:2x2x1
jax: 0.10.0
libtpu: 0.0.40
codegen_flags: <defaults>
</compile_context>

<pallas_src>
import math
import functools

import jax
import jax.numpy as jnp
from jax import lax
from jax.experimental import pallas as pl
from jax.experimental.pallas import tpu as pltpu


# ----------------------------- kernel helpers ------------------------------

def _gelu(x):
    # exact (erf) GELU, matching torch.nn.GELU() default
    return 0.5 * x * (1.0 + lax.erf(x / math.sqrt(2.0)))


def _layernorm(x, gamma, beta, eps=1e-5):
    mu = jnp.mean(x, axis=-1, keepdims=True)
    var = jnp.mean((x - mu) ** 2, axis=-1, keepdims=True)
    return (x - mu) * lax.rsqrt(var + eps) * gamma + beta


# Row indices into the packed square-weight stack (8, E, E).
_W_CF1A, _W_CF2, _W_K, _W_Q, _W_V, _W_PROJ, _W_MLP1, _W_MLP2 = range(8)
# Row indices into the packed bias/LayerNorm vector slab (12, E).
(_V_CFB1, _V_CFB2, _V_LN1G, _V_LN1B, _V_KB, _V_QB, _V_VB,
 _V_PROJB, _V_LN2G, _V_LN2B, _V_MLPB1, _V_MLPB2) = range(12)


# ------------------------------- Pallas kernel ------------------------------

def fuser_kernel(a_ref, b_ref, wsq_ref, cf_w1b_ref, perf_w_ref, vec_ref,
                 out_ref, *, emb, m, c_out, epsilon, bblk, t):
    f32, bf16 = jnp.float32, jnp.bfloat16
    bt = bblk * t

    # f32 inputs DMA'd straight from HBM; cast to bf16 in-register.
    a2 = a_ref[...].reshape(bt, emb).astype(bf16)          # (bt, emb)
    b2 = b_ref[...].reshape(bt, c_out).astype(bf16)        # (bt, c_out)

    vecs = vec_ref[...]                                    # (12, emb) f32

    def vrow(i):
        return vecs[i:i + 1, :]                            # (1, emb), broadcasts

    # ---------------- concatFuse: Linear -> GELU -> Linear ----------------
    # concat([a, b]) @ W1^T == a @ W1a + b @ W1b (W1 split column-wise)
    h = (jnp.dot(a2, wsq_ref[_W_CF1A], preferred_element_type=f32)
         + jnp.dot(b2, cf_w1b_ref[...], preferred_element_type=f32)
         + vrow(_V_CFB1))
    h = _gelu(h)
    x0 = (jnp.dot(h.astype(bf16), wsq_ref[_W_CF2], preferred_element_type=f32)
          + vrow(_V_CFB2))                                 # (bt, emb) f32

    # ---------------- Token_performer: single_attn -------------------------
    xn = _layernorm(x0, vrow(_V_LN1G), vrow(_V_LN1B)).astype(bf16)
    # three separate (emb, emb) matmuls — no lane slicing of a fused kqv.
    k = jnp.dot(xn, wsq_ref[_W_K], preferred_element_type=f32) + vrow(_V_KB)
    q = jnp.dot(xn, wsq_ref[_W_Q], preferred_element_type=f32) + vrow(_V_QB)
    v = jnp.dot(xn, wsq_ref[_W_V], preferred_element_type=f32) + vrow(_V_VB)

    w_t = perf_w_ref[...]                                  # (emb, m) bf16
    inv_sqrt_m = 1.0 / math.sqrt(m)

    def prm_exp(z):
        # exp / subtraction in f32; only the matmul runs on the MXU in bf16
        xd = 0.5 * jnp.sum(z * z, axis=-1, keepdims=True)              # (bt, 1)
        wtx = jnp.dot(z.astype(bf16), w_t, preferred_element_type=f32)  # (bt, m)
        return jnp.exp(wtx - xd) * inv_sqrt_m

    # Batched (per-image) performer reductions — no Python unroll, no concat.
    kp = prm_exp(k).reshape(bblk, t, m)                    # (b, t, m) f32
    qp = prm_exp(q).reshape(bblk, t, m)                    # (b, t, m) f32
    v3 = v.reshape(bblk, t, emb)                           # (b, t, emb) f32

    kp_sum = jnp.sum(kp, axis=1, keepdims=True)            # (b, 1, m)
    d = jnp.sum(qp * kp_sum, axis=-1, keepdims=True)       # (b, t, 1)

    kptv = jnp.einsum('bte,btm->bem', v3.astype(bf16), kp.astype(bf16),
                      preferred_element_type=f32)          # (b, emb, m)
    y = jnp.einsum('btm,bem->bte', qp.astype(bf16), kptv.astype(bf16),
                   preferred_element_type=f32)             # (b, t, emb)
    y = y * pl.reciprocal(d + epsilon, approx=True)
    y = y.reshape(bt, emb)

    y = (jnp.dot(y.astype(bf16), wsq_ref[_W_PROJ], preferred_element_type=f32)
         + vrow(_V_PROJB))
    # dropout (dp1) is identity in eval mode
    x1 = x0 + y

    # ---------------- Token_performer: mlp block ---------------------------
    xn2 = _layernorm(x1, vrow(_V_LN2G), vrow(_V_LN2B)).astype(bf16)
    hm = _gelu(jnp.dot(xn2, wsq_ref[_W_MLP1], preferred_element_type=f32)
               + vrow(_V_MLPB1))
    mo = (jnp.dot(hm.astype(bf16), wsq_ref[_W_MLP2], preferred_element_type=f32)
          + vrow(_V_MLPB2))
    # dropout (dp2) is identity in eval mode
    out_ref[...] = (x1 + mo).reshape(bblk, t, emb).astype(out_ref.dtype)


# ------------------------------- wrapper ------------------------------------

def make_params(key, emb_dim, cur_stg):
    """Deterministic parameter init mirroring the module's __init__ shapes."""
    emb = emb_dim
    m = emb // 2                      # kernel_ratio = 0.5
    dc = emb_dim + cur_stg // 4
    ks = jax.random.split(key, 12)

    def lin(k, out_d, in_d):
        kw, kb = jax.random.split(k)
        w = jax.random.normal(kw, (out_d, in_d), jnp.float32) * (1.0 / math.sqrt(in_d))
        b = jax.random.normal(kb, (1, out_d), jnp.float32) * 0.02
        return w, b

    cf_w1, cf_b1 = lin(ks[0], emb_dim, dc)
    cf_w2, cf_b2 = lin(ks[1], emb_dim, emb_dim)
    kqv_w, kqv_b = lin(ks[2], 3 * emb, emb_dim)
    proj_w, proj_b = lin(ks[3], emb, emb)
    mlp_w1, mlp_b1 = lin(ks[4], emb, emb)
    mlp_w2, mlp_b2 = lin(ks[5], emb, emb)

    ln1_g = jnp.ones((1, emb_dim), jnp.float32)
    ln1_b = jnp.zeros((1, emb_dim), jnp.float32)
    ln2_g = jnp.ones((1, emb), jnp.float32)
    ln2_b = jnp.zeros((1, emb), jnp.float32)

    # performer random features: orthogonal rows (m <= emb) scaled by sqrt(m)
    g = jax.random.normal(ks[6], (emb, m), jnp.float32)
    qmat, _ = jnp.linalg.qr(g)                 # (emb, m) orthonormal columns
    perf_w = qmat.T * math.sqrt(m)             # (m, emb) orthonormal rows * sqrt(m)

    return dict(cf_w1=cf_w1, cf_b1=cf_b1, cf_w2=cf_w2, cf_b2=cf_b2,
                ln1_g=ln1_g, ln1_b=ln1_b,
                kqv_w=kqv_w, kqv_b=kqv_b,
                perf_w=perf_w,
                proj_w=proj_w, proj_b=proj_b,
                ln2_g=ln2_g, ln2_b=ln2_b,
                mlp_w1=mlp_w1, mlp_b1=mlp_b1, mlp_w2=mlp_w2, mlp_b2=mlp_b2)


def _pick_bblk(B, T, target_rows=2048):
    """Largest divisor of B so that bblk*T ~ target matmul M, keeping grid>=2."""
    cap = max(1, target_rows // max(T, 1))
    if B >= 2:
        cap = min(cap, B // 2)   # grid >= 2: both v7x TCs busy, pipeline alive
    best = 1
    for d in range(1, B + 1):
        if B % d == 0 and d <= cap:
            best = d
    return best


def _vmem_limit_bytes():
    mib = 1024 * 1024
    try:
        cap = int(pltpu.get_tpu_info().vmem_capacity_bytes)
    except Exception:
        cap = 64 * mib            # conservative fallback (v7x-sized)
    # leave headroom for internal scratch / semaphores; cap at ~100 MiB
    return int(max(32 * mib, min(cap - 16 * mib, 100 * mib)))


def fuser_forward(a, b, params, *, hw, emb_dim, cur_stg, out_dtype=jnp.bfloat16):
    """a: (B, 4*hw*hw, emb_dim)   b: (B, hw*hw, cur_stg)   -> (B, 4*hw*hw, emb_dim)"""
    B, Tb, Cb = b.shape
    assert Tb == hw * hw and Cb == cur_stg
    T = 4 * hw * hw
    emb = emb_dim                      # Token_performer(dim=emb_dim, in_dim=emb_dim)
    m = emb // 2
    c_out = cur_stg // 4

    f32, bf16 = jnp.float32, jnp.bfloat16

    # --- PixelShuffle(2) on NCHW, then Unfold(kernel=1) + transpose (pure layout) ---
    b_nchw = jnp.transpose(b, (0, 2, 1)).reshape(B, Cb, hw, hw)
    b_ps = b_nchw.reshape(B, c_out, 2, 2, hw, hw)
    b_ps = jnp.transpose(b_ps, (0, 1, 4, 2, 5, 3)).reshape(B, c_out, 2 * hw, 2 * hw)
    b_tok = b_ps.reshape(B, c_out, T).transpose(0, 2, 1).astype(f32)   # (B, T, c_out)

    p = params
    # Pre-transpose weights once to (in, out) and pack into slabs (fewer DMAs).
    cf_w1a = p['cf_w1'][:, :emb_dim].T                    # (emb, emb)
    cf_w1b = p['cf_w1'][:, emb_dim:].T.astype(bf16)       # (c_out, emb)
    cf_w2 = p['cf_w2'].T
    k_w = p['kqv_w'][0 * emb:1 * emb, :].T
    q_w = p['kqv_w'][1 * emb:2 * emb, :].T
    v_w = p['kqv_w'][2 * emb:3 * emb, :].T
    proj_w = p['proj_w'].T
    mlp_w1 = p['mlp_w1'].T
    mlp_w2 = p['mlp_w2'].T
    wsq = jnp.stack([cf_w1a, cf_w2, k_w, q_w, v_w, proj_w, mlp_w1, mlp_w2],
                    axis=0).astype(bf16)                  # (8, emb, emb)

    perf_w = p['perf_w'].T.astype(bf16)                   # (emb, m)

    kqv_b = p['kqv_b']
    vecs = jnp.concatenate([
        p['cf_b1'], p['cf_b2'], p['ln1_g'], p['ln1_b'],
        kqv_b[:, 0 * emb:1 * emb], kqv_b[:, 1 * emb:2 * emb], kqv_b[:, 2 * emb:3 * emb],
        p['proj_b'], p['ln2_g'], p['ln2_b'], p['mlp_b1'], p['mlp_b2'],
    ], axis=0).astype(f32)                                # (12, emb)

    bblk = _pick_bblk(B, T)
    grid = (B // bblk,)

    kernel = functools.partial(fuser_kernel, emb=emb, m=m, c_out=c_out,
                               epsilon=1e-8, bblk=bblk, t=T)

    out = pl.pallas_call(
        kernel,
        out_shape=jax.ShapeDtypeStruct((B, T, emb), out_dtype),
        grid=grid,
        in_specs=[
            pl.BlockSpec((bblk, T, emb_dim), lambda i: (i, 0, 0)),   # a (f32)
            pl.BlockSpec((bblk, T, c_out), lambda i: (i, 0, 0)),     # b (f32)
            pl.BlockSpec(wsq.shape, lambda i: (0, 0, 0)),            # weight stack
            pl.BlockSpec(cf_w1b.shape, lambda i: (0, 0)),            # cf_w1b
            pl.BlockSpec(perf_w.shape, lambda i: (0, 0)),            # performer w
            pl.BlockSpec(vecs.shape, lambda i: (0, 0)),              # bias/LN slab
        ],
        out_specs=pl.BlockSpec((bblk, T, emb), lambda i: (i, 0, 0)),
        compiler_params=pltpu.CompilerParams(
            dimension_semantics=("parallel",),
            vmem_limit_bytes=_vmem_limit_bytes()),
    )(a.astype(f32), b_tok, wsq, cf_w1b, perf_w, vecs)
    return out


# --------------------------------- main --------------------------------------

if __name__ == "__main__":
    # small, shape-consistent example: emb_dim=32, hw=4, cur_stg=64
    emb_dim, hw, cur_stg = 32, 4, 64
    B = 2
    T = 4 * hw * hw                      # 64 tokens after PixelShuffle(2)

    key = jax.random.PRNGKey(0)
    ka, kb, kp = jax.random.split(key, 3)
    a = jax.random.normal(ka, (B, T, emb_dim), jnp.float32)
    b = jax.random.normal(kb, (B, hw * hw, cur_stg), jnp.float32)

    params = make_params(kp, emb_dim, cur_stg)

    out = fuser_forward(a, b, params, hw=hw, emb_dim=emb_dim, cur_stg=cur_stg)
    out = jax.block_until_ready(out)
    assert out.shape == (B, T, emb_dim)
    assert bool(jnp.all(jnp.isfinite(out)))
    print("KERNEL_OK")
</pallas_src>

<mosaic_0001>
module attributes {stable_mosaic.version = 11 : i64} {
  func.func @fuser_kernel(%arg0: i32, %arg1: memref<1x64x32xf32, #tpu.memory_space<vmem>>, %arg2: memref<1x64x16xf32, #tpu.memory_space<vmem>>, %arg3: memref<8x32x32xbf16, #tpu.memory_space<vmem>>, %arg4: memref<16x32xbf16, #tpu.memory_space<vmem>>, %arg5: memref<32x16xbf16, #tpu.memory_space<vmem>>, %arg6: memref<12x32xf32, #tpu.memory_space<vmem>>, %arg7: memref<1x64x32xbf16, #tpu.memory_space<vmem>>) attributes {dimension_semantics = [#tpu.dimension_semantics<parallel>], iteration_bounds = array<i64: 2>, scalar_prefetch = 0 : i64, scratch_operands = 0 : i64, tpu.core_type = #tpu.core_type<tc>, window_params = [{transform_indices = @transform_0, window_bounds = array<i64: 1, 64, 32>}, {transform_indices = @transform_1, window_bounds = array<i64: 1, 64, 16>}, {pipeline_mode = #tpu.pipeline_mode<synchronous>, transform_indices = @transform_2, window_bounds = array<i64: 8, 32, 32>}, {pipeline_mode = #tpu.pipeline_mode<synchronous>, transform_indices = @transform_3, window_bounds = array<i64: 16, 32>}, {pipeline_mode = #tpu.pipeline_mode<synchronous>, transform_indices = @transform_4, window_bounds = array<i64: 32, 16>}, {pipeline_mode = #tpu.pipeline_mode<synchronous>, transform_indices = @transform_5, window_bounds = array<i64: 12, 32>}, {transform_indices = @transform_6, window_bounds = array<i64: 1, 64, 32>}]} {
    %c0 = arith.constant 0 : index
    %c0_0 = arith.constant 0 : index
    %c0_1 = arith.constant 0 : index
    %0 = vector.load %arg1[%c0, %c0_0, %c0_1] : memref<1x64x32xf32, #tpu.memory_space<vmem>>, vector<1x64x32xf32>
    %1 = vector.shape_cast %0 : vector<1x64x32xf32> to vector<64x32xf32>
    %2 = arith.truncf %1 : vector<64x32xf32> to vector<64x32xbf16>
    %c0_2 = arith.constant 0 : index
    %c0_3 = arith.constant 0 : index
    %c0_4 = arith.constant 0 : index
    %3 = vector.load %arg2[%c0_2, %c0_3, %c0_4] : memref<1x64x16xf32, #tpu.memory_space<vmem>>, vector<1x64x16xf32>
    %4 = vector.shape_cast %3 : vector<1x64x16xf32> to vector<64x16xf32>
    %5 = arith.truncf %4 : vector<64x16xf32> to vector<64x16xbf16>
    %c0_5 = arith.constant 0 : index
    %c0_6 = arith.constant 0 : index
    %6 = vector.load %arg6[%c0_5, %c0_6] : memref<12x32xf32, #tpu.memory_space<vmem>>, vector<12x32xf32>
    %c0_7 = arith.constant 0 : index
    %c0_8 = arith.constant 0 : index
    %c0_9 = arith.constant 0 : index
    %7 = vector.load %arg3[%c0_7, %c0_8, %c0_9] : memref<8x32x32xbf16, #tpu.memory_space<vmem>>, vector<1x32x32xbf16>
    %8 = vector.shape_cast %7 : vector<1x32x32xbf16> to vector<32x32xbf16>
    %cst = arith.constant dense<0.000000e+00> : vector<64x32xf32>
    %9 = tpu.matmul %2, %8, %cst {dimension_numbers = #tpu.dot_dimension_numbers<[1], [0], [0], [1], [0, 0, 1, 1], [], []>} : vector<64x32xbf16>, vector<32x32xbf16>, vector<64x32xf32> -> vector<64x32xf32>
    %c0_10 = arith.constant 0 : index
    %c0_11 = arith.constant 0 : index
    %10 = vector.load %arg4[%c0_10, %c0_11] : memref<16x32xbf16, #tpu.memory_space<vmem>>, vector<16x32xbf16>
    %cst_12 = arith.constant dense<0.000000e+00> : vector<64x32xf32>
    %11 = tpu.matmul %5, %10, %cst_12 {dimension_numbers = #tpu.dot_dimension_numbers<[1], [0], [0], [1], [0, 0, 1, 1], [], []>} : vector<64x16xbf16>, vector<16x32xbf16>, vector<64x32xf32> -> vector<64x32xf32>
    %12 = arith.addf %9, %11 : vector<64x32xf32>
    %13 = vector.extract_strided_slice %6 {offsets = [0, 0], sizes = [1, 32], strides = [1, 1]} : vector<12x32xf32> to vector<1x32xf32>
    %14 = vector.broadcast %13 : vector<1x32xf32> to vector<64x32xf32>
    %15 = arith.addf %12, %14 : vector<64x32xf32>
    %cst_13 = arith.constant 5.000000e-01 : f32
    %16 = vector.broadcast %cst_13 : f32 to vector<64x32xf32>
    %17 = arith.mulf %16, %15 : vector<64x32xf32>
    %cst_14 = arith.constant 1.41421354 : f32
    %18 = vector.broadcast %cst_14 : f32 to vector<64x32xf32>
    %19 = arith.divf %15, %18 : vector<64x32xf32>
    %20 = math.erf %19 : vector<64x32xf32>
    %cst_15 = arith.constant 1.000000e+00 : f32
    %21 = vector.broadcast %cst_15 : f32 to vector<64x32xf32>
    %22 = arith.addf %21, %20 : vector<64x32xf32>
    %23 = arith.mulf %17, %22 : vector<64x32xf32>
    %24 = arith.truncf %23 : vector<64x32xf32> to vector<64x32xbf16>
    %c1 = arith.constant 1 : index
    %c0_16 = arith.constant 0 : index
    %c0_17 = arith.constant 0 : index
    %25 = vector.load %arg3[%c1, %c0_16, %c0_17] : memref<8x32x32xbf16, #tpu.memory_space<vmem>>, vector<1x32x32xbf16>
    %26 = vector.shape_cast %25 : vector<1x32x32xbf16> to vector<32x32xbf16>
    %cst_18 = arith.constant dense<0.000000e+00> : vector<64x32xf32>
    %27 = tpu.matmul %24, %26, %cst_18 {dimension_numbers = #tpu.dot_dimension_numbers<[1], [0], [0], [1], [0, 0, 1, 1], [], []>} : vector<64x32xbf16>, vector<32x32xbf16>, vector<64x32xf32> -> vector<64x32xf32>
    %28 = vector.extract_strided_slice %6 {offsets = [1, 0], sizes = [1, 32], strides = [1, 1]} : vector<12x32xf32> to vector<1x32xf32>
    %29 = vector.broadcast %28 : vector<1x32xf32> to vector<64x32xf32>
    %30 = arith.addf %27, %29 : vector<64x32xf32>
    %31 = vector.extract_strided_slice %6 {offsets = [2, 0], sizes = [1, 32], strides = [1, 1]} : vector<12x32xf32> to vector<1x32xf32>
    %32 = vector.extract_strided_slice %6 {offsets = [3, 0], sizes = [1, 32], strides = [1, 1]} : vector<12x32xf32> to vector<1x32xf32>
    %cst_19 = arith.constant dense<0.000000e+00> : vector<64xf32>
    %33 = vector.multi_reduction <add>, %30, %cst_19 [1] : vector<64x32xf32> to vector<64xf32>
    %34 = vector.shape_cast %33 : vector<64xf32> to vector<64x1xf32>
    %cst_20 = arith.constant 3.200000e+01 : f32
    %35 = vector.broadcast %cst_20 : f32 to vector<64x1xf32>
    %36 = arith.divf %34, %35 : vector<64x1xf32>
    %37 = vector.broadcast %36 : vector<64x1xf32> to vector<64x32xf32>
    %38 = arith.subf %30, %37 : vector<64x32xf32>
    %39 = arith.mulf %38, %38 : vector<64x32xf32>
    %cst_21 = arith.constant dense<0.000000e+00> : vector<64xf32>
    %40 = vector.multi_reduction <add>, %39, %cst_21 [1] : vector<64x32xf32> to vector<64xf32>
    %41 = vector.shape_cast %40 : vector<64xf32> to vector<64x1xf32>
    %cst_22 = arith.constant 3.200000e+01 : f32
    %42 = vector.broadcast %cst_22 : f32 to vector<64x1xf32>
    %43 = arith.divf %41, %42 : vector<64x1xf32>
    %44 = vector.broadcast %36 : vector<64x1xf32> to vector<64x32xf32>
    %45 = arith.subf %30, %44 : vector<64x32xf32>
    %cst_23 = arith.constant 9.99999974E-6 : f32
    %46 = vector.broadcast %cst_23 : f32 to vector<64x1xf32>
    %47 = arith.addf %43, %46 : vector<64x1xf32>
    %48 = math.rsqrt %47 : vector<64x1xf32>
    %49 = vector.broadcast %48 : vector<64x1xf32> to vector<64x32xf32>
    %50 = arith.mulf %45, %49 : vector<64x32xf32>
    %51 = vector.broadcast %31 : vector<1x32xf32> to vector<64x32xf32>
    %52 = arith.mulf %50, %51 : vector<64x32xf32>
    %53 = vector.broadcast %32 : vector<1x32xf32> to vector<64x32xf32>
    %54 = arith.addf %52, %53 : vector<64x32xf32>
    %55 = arith.truncf %54 : vector<64x32xf32> to vector<64x32xbf16>
    %c2 = arith.constant 2 : index
    %c0_24 = arith.constant 0 : index
    %c0_25 = arith.constant 0 : index
    %56 = vector.load %arg3[%c2, %c0_24, %c0_25] : memref<8x32x32xbf16, #tpu.memory_space<vmem>>, vector<1x32x32xbf16>
    %57 = vector.shape_cast %56 : vector<1x32x32xbf16> to vector<32x32xbf16>
    %cst_26 = arith.constant dense<0.000000e+00> : vector<64x32xf32>
    %58 = tpu.matmul %55, %57, %cst_26 {dimension_numbers = #tpu.dot_dimension_numbers<[1], [0], [0], [1], [0, 0, 1, 1], [], []>} : vector<64x32xbf16>, vector<32x32xbf16>, vector<64x32xf32> -> vector<64x32xf32>
    %59 = vector.extract_strided_slice %6 {offsets = [4, 0], sizes = [1, 32], strides = [1, 1]} : vector<12x32xf32> to vector<1x32xf32>
    %60 = vector.broadcast %59 : vector<1x32xf32> to vector<64x32xf32>
    %61 = arith.addf %58, %60 : vector<64x32xf32>
    %c3 = arith.constant 3 : index
    %c0_27 = arith.constant 0 : index
    %c0_28 = arith.constant 0 : index
    %62 = vector.load %arg3[%c3, %c0_27, %c0_28] : memref<8x32x32xbf16, #tpu.memory_space<vmem>>, vector<1x32x32xbf16>
    %63 = vector.shape_cast %62 : vector<1x32x32xbf16> to vector<32x32xbf16>
    %cst_29 = arith.constant dense<0.000000e+00> : vector<64x32xf32>
    %64 = tpu.matmul %55, %63, %cst_29 {dimension_numbers = #tpu.dot_dimension_numbers<[1], [0], [0], [1], [0, 0, 1, 1], [], []>} : vector<64x32xbf16>, vector<32x32xbf16>, vector<64x32xf32> -> vector<64x32xf32>
    %65 = vector.extract_strided_slice %6 {offsets = [5, 0], sizes = [1, 32], strides = [1, 1]} : vector<12x32xf32> to vector<1x32xf32>
    %66 = vector.broadcast %65 : vector<1x32xf32> to vector<64x32xf32>
    %67 = arith.addf %64, %66 : vector<64x32xf32>
    %c4 = arith.constant 4 : index
    %c0_30 = arith.constant 0 : index
    %c0_31 = arith.constant 0 : index
    %68 = vector.load %arg3[%c4, %c0_30, %c0_31] : memref<8x32x32xbf16, #tpu.memory_space<vmem>>, vector<1x32x32xbf16>
    %69 = vector.shape_cast %68 : vector<1x32x32xbf16> to vector<32x32xbf16>
    %cst_32 = arith.constant dense<0.000000e+00> : vector<64x32xf32>
    %70 = tpu.matmul %55, %69, %cst_32 {dimension_numbers = #tpu.dot_dimension_numbers<[1], [0], [0], [1], [0, 0, 1, 1], [], []>} : vector<64x32xbf16>, vector<32x32xbf16>, vector<64x32xf32> -> vector<64x32xf32>
    %71 = vector.extract_strided_slice %6 {offsets = [6, 0], sizes = [1, 32], strides = [1, 1]} : vector<12x32xf32> to vector<1x32xf32>
    %72 = vector.broadcast %71 : vector<1x32xf32> to vector<64x32xf32>
    %73 = arith.addf %70, %72 : vector<64x32xf32>
    %c0_33 = arith.constant 0 : index
    %c0_34 = arith.constant 0 : index
    %74 = vector.load %arg5[%c0_33, %c0_34] : memref<32x16xbf16, #tpu.memory_space<vmem>>, vector<32x16xbf16>
    %75 = arith.mulf %61, %61 : vector<64x32xf32>
    %cst_35 = arith.constant dense<0.000000e+00> : vector<64xf32>
    %76 = vector.multi_reduction <add>, %75, %cst_35 [1] : vector<64x32xf32> to vector<64xf32>
    %77 = vector.shape_cast %76 : vector<64xf32> to vector<64x1xf32>
    %cst_36 = arith.constant 5.000000e-01 : f32
    %78 = vector.broadcast %cst_36 : f32 to vector<64x1xf32>
    %79 = arith.mulf %78, %77 : vector<64x1xf32>
    %80 = arith.truncf %61 : vector<64x32xf32> to vector<64x32xbf16>
    %cst_37 = arith.constant dense<0.000000e+00> : vector<64x16xf32>
    %81 = tpu.matmul %80, %74, %cst_37 {dimension_numbers = #tpu.dot_dimension_numbers<[1], [0], [0], [1], [0, 0, 1, 1], [], []>} : vector<64x32xbf16>, vector<32x16xbf16>, vector<64x16xf32> -> vector<64x16xf32>
    %82 = vector.broadcast %79 : vector<64x1xf32> to vector<64x16xf32>
    %83 = arith.subf %81, %82 : vector<64x16xf32>
    %84 = math.exp %83 : vector<64x16xf32>
    %cst_38 = arith.constant 2.500000e-01 : f32
    %85 = vector.broadcast %cst_38 : f32 to vector<64x16xf32>
    %86 = arith.mulf %84, %85 : vector<64x16xf32>
    %87 = vector.shape_cast %86 : vector<64x16xf32> to vector<1x64x16xf32>
    %88 = arith.mulf %67, %67 : vector<64x32xf32>
    %cst_39 = arith.constant dense<0.000000e+00> : vector<64xf32>
    %89 = vector.multi_reduction <add>, %88, %cst_39 [1] : vector<64x32xf32> to vector<64xf32>
    %90 = vector.shape_cast %89 : vector<64xf32> to vector<64x1xf32>
    %cst_40 = arith.constant 5.000000e-01 : f32
    %91 = vector.broadcast %cst_40 : f32 to vector<64x1xf32>
    %92 = arith.mulf %91, %90 : vector<64x1xf32>
    %93 = arith.truncf %67 : vector<64x32xf32> to vector<64x32xbf16>
    %cst_41 = arith.constant dense<0.000000e+00> : vector<64x16xf32>
    %94 = tpu.matmul %93, %74, %cst_41 {dimension_numbers = #tpu.dot_dimension_numbers<[1], [0], [0], [1], [0, 0, 1, 1], [], []>} : vector<64x32xbf16>, vector<32x16xbf16>, vector<64x16xf32> -> vector<64x16xf32>
    %95 = vector.broadcast %92 : vector<64x1xf32> to vector<64x16xf32>
    %96 = arith.subf %94, %95 : vector<64x16xf32>
    %97 = math.exp %96 : vector<64x16xf32>
    %cst_42 = arith.constant 2.500000e-01 : f32
    %98 = vector.broadcast %cst_42 : f32 to vector<64x16xf32>
    %99 = arith.mulf %97, %98 : vector<64x16xf32>
    %100 = vector.shape_cast %99 : vector<64x16xf32> to vector<1x64x16xf32>
    %101 = vector.shape_cast %73 : vector<64x32xf32> to vector<1x64x32xf32>
    %cst_43 = arith.constant dense<0.000000e+00> : vector<1x16xf32>
    %102 = vector.multi_reduction <add>, %87, %cst_43 [1] : vector<1x64x16xf32> to vector<1x16xf32>
    %103 = vector.shape_cast %102 : vector<1x16xf32> to vector<1x1x16xf32>
    %104 = vector.broadcast %103 : vector<1x1x16xf32> to vector<1x64x16xf32>
    %105 = arith.mulf %100, %104 : vector<1x64x16xf32>
    %cst_44 = arith.constant dense<0.000000e+00> : vector<1x64xf32>
    %106 = vector.multi_reduction <add>, %105, %cst_44 [2] : vector<1x64x16xf32> to vector<1x64xf32>
    %107 = vector.shape_cast %106 : vector<1x64xf32> to vector<1x64x1xf32>
    %108 = arith.truncf %101 : vector<1x64x32xf32> to vector<1x64x32xbf16>
    %109 = arith.truncf %87 : vector<1x64x16xf32> to vector<1x64x16xbf16>
    "tpu.trace_start"() <{level = 10 : i32, message = "bte,btm->bem"}> : () -> ()
    %cst_45 = arith.constant dense<0.000000e+00> : vector<1x32x16xf32>
    %110 = tpu.matmul %108, %109, %cst_45 {dimension_numbers = #tpu.dot_dimension_numbers<[1], [1], [2], [2], [0, 0, 0, 2, 1, 2], [0], [0]>} : vector<1x64x32xbf16>, vector<1x64x16xbf16>, vector<1x32x16xf32> -> vector<1x32x16xf32>
    "tpu.trace_stop"() : () -> ()
    %111 = arith.truncf %100 : vector<1x64x16xf32> to vector<1x64x16xbf16>
    %112 = arith.truncf %110 : vector<1x32x16xf32> to vector<1x32x16xbf16>
    "tpu.trace_start"() <{level = 10 : i32, message = "btm,bem->bte"}> : () -> ()
    %cst_46 = arith.constant dense<0.000000e+00> : vector<1x64x32xf32>
    %113 = tpu.matmul %111, %112, %cst_46 {dimension_numbers = #tpu.dot_dimension_numbers<[2], [2], [1], [1], [0, 0, 0, 1, 1, 1], [0], [0]>} : vector<1x64x16xbf16>, vector<1x32x16xbf16>, vector<1x64x32xf32> -> vector<1x64x32xf32>
    "tpu.trace_stop"() : () -> ()
    %cst_47 = arith.constant 9.99999993E-9 : f32
    %114 = vector.broadcast %cst_47 : f32 to vector<1x64x1xf32>
    %115 = arith.addf %107, %114 : vector<1x64x1xf32>
    %116 = tpu.reciprocal %115 {approx = true} : vector<1x64x1xf32> -> vector<1x64x1xf32>
    %117 = vector.broadcast %116 : vector<1x64x1xf32> to vector<1x64x32xf32>
    %118 = arith.mulf %113, %117 : vector<1x64x32xf32>
    %119 = vector.shape_cast %118 : vector<1x64x32xf32> to vector<64x32xf32>
    %120 = arith.truncf %119 : vector<64x32xf32> to vector<64x32xbf16>
    %c5 = arith.constant 5 : index
    %c0_48 = arith.constant 0 : index
    %c0_49 = arith.constant 0 : index
    %121 = vector.load %arg3[%c5, %c0_48, %c0_49] : memref<8x32x32xbf16, #tpu.memory_space<vmem>>, vector<1x32x32xbf16>
    %122 = vector.shape_cast %121 : vector<1x32x32xbf16> to vector<32x32xbf16>
    %cst_50 = arith.constant dense<0.000000e+00> : vector<64x32xf32>
    %123 = tpu.matmul %120, %122, %cst_50 {dimension_numbers = #tpu.dot_dimension_numbers<[1], [0], [0], [1], [0, 0, 1, 1], [], []>} : vector<64x32xbf16>, vector<32x32xbf16>, vector<64x32xf32> -> vector<64x32xf32>
    %124 = vector.extract_strided_slice %6 {offsets = [7, 0], sizes = [1, 32], strides = [1, 1]} : vector<12x32xf32> to vector<1x32xf32>
    %125 = vector.broadcast %124 : vector<1x32xf32> to vector<64x32xf32>
    %126 = arith.addf %123, %125 : vector<64x32xf32>
    %127 = arith.addf %30, %126 : vector<64x32xf32>
    %128 = vector.extract_strided_slice %6 {offsets = [8, 0], sizes = [1, 32], strides = [1, 1]} : vector<12x32xf32> to vector<1x32xf32>
    %129 = vector.extract_strided_slice %6 {offsets = [9, 0], sizes = [1, 32], strides = [1, 1]} : vector<12x32xf32> to vector<1x32xf32>
    %cst_51 = arith.constant dense<0.000000e+00> : vector<64xf32>
    %130 = vector.multi_reduction <add>, %127, %cst_51 [1] : vector<64x32xf32> to vector<64xf32>
    %131 = vector.shape_cast %130 : vector<64xf32> to vector<64x1xf32>
    %cst_52 = arith.constant 3.200000e+01 : f32
    %132 = vector.broadcast %cst_52 : f32 to vector<64x1xf32>
    %133 = arith.divf %131, %132 : vector<64x1xf32>
    %134 = vector.broadcast %133 : vector<64x1xf32> to vector<64x32xf32>
    %135 = arith.subf %127, %134 : vector<64x32xf32>
    %136 = arith.mulf %135, %135 : vector<64x32xf32>
    %cst_53 = arith.constant dense<0.000000e+00> : vector<64xf32>
    %137 = vector.multi_reduction <add>, %136, %cst_53 [1] : vector<64x32xf32> to vector<64xf32>
    %138 = vector.shape_cast %137 : vector<64xf32> to vector<64x1xf32>
    %cst_54 = arith.constant 3.200000e+01 : f32
    %139 = vector.broadcast %cst_54 : f32 to vector<64x1xf32>
    %140 = arith.divf %138, %139 : vector<64x1xf32>
    %141 = vector.broadcast %133 : vector<64x1xf32> to vector<64x32xf32>
    %142 = arith.subf %127, %141 : vector<64x32xf32>
    %cst_55 = arith.constant 9.99999974E-6 : f32
    %143 = vector.broadcast %cst_55 : f32 to vector<64x1xf32>
    %144 = arith.addf %140, %143 : vector<64x1xf32>
    %145 = math.rsqrt %144 : vector<64x1xf32>
    %146 = vector.broadcast %145 : vector<64x1xf32> to vector<64x32xf32>
    %147 = arith.mulf %142, %146 : vector<64x32xf32>
    %148 = vector.broadcast %128 : vector<1x32xf32> to vector<64x32xf32>
    %149 = arith.mulf %147, %148 : vector<64x32xf32>
    %150 = vector.broadcast %129 : vector<1x32xf32> to vector<64x32xf32>
    %151 = arith.addf %149, %150 : vector<64x32xf32>
    %152 = arith.truncf %151 : vector<64x32xf32> to vector<64x32xbf16>
    %c6 = arith.constant 6 : index
    %c0_56 = arith.constant 0 : index
    %c0_57 = arith.constant 0 : index
    %153 = vector.load %arg3[%c6, %c0_56, %c0_57] : memref<8x32x32xbf16, #tpu.memory_space<vmem>>, vector<1x32x32xbf16>
    %154 = vector.shape_cast %153 : vector<1x32x32xbf16> to vector<32x32xbf16>
    %cst_58 = arith.constant dense<0.000000e+00> : vector<64x32xf32>
    %155 = tpu.matmul %152, %154, %cst_58 {dimension_numbers = #tpu.dot_dimension_numbers<[1], [0], [0], [1], [0, 0, 1, 1], [], []>} : vector<64x32xbf16>, vector<32x32xbf16>, vector<64x32xf32> -> vector<64x32xf32>
    %156 = vector.extract_strided_slice %6 {offsets = [10, 0], sizes = [1, 32], strides = [1, 1]} : vector<12x32xf32> to vector<1x32xf32>
    %157 = vector.broadcast %156 : vector<1x32xf32> to vector<64x32xf32>
    %158 = arith.addf %155, %157 : vector<64x32xf32>
    %cst_59 = arith.constant 5.000000e-01 : f32
    %159 = vector.broadcast %cst_59 : f32 to vector<64x32xf32>
    %160 = arith.mulf %159, %158 : vector<64x32xf32>
    %cst_60 = arith.constant 1.41421354 : f32
    %161 = vector.broadcast %cst_60 : f32 to vector<64x32xf32>
    %162 = arith.divf %158, %161 : vector<64x32xf32>
    %163 = math.erf %162 : vector<64x32xf32>
    %cst_61 = arith.constant 1.000000e+00 : f32
    %164 = vector.broadcast %cst_61 : f32 to vector<64x32xf32>
    %165 = arith.addf %164, %163 : vector<64x32xf32>
    %166 = arith.mulf %160, %165 : vector<64x32xf32>
    %167 = arith.truncf %166 : vector<64x32xf32> to vector<64x32xbf16>
    %c7 = arith.constant 7 : index
    %c0_62 = arith.constant 0 : index
    %c0_63 = arith.constant 0 : index
    %168 = vector.load %arg3[%c7, %c0_62, %c0_63] : memref<8x32x32xbf16, #tpu.memory_space<vmem>>, vector<1x32x32xbf16>
    %169 = vector.shape_cast %168 : vector<1x32x32xbf16> to vector<32x32xbf16>
    %cst_64 = arith.constant dense<0.000000e+00> : vector<64x32xf32>
    %170 = tpu.matmul %167, %169, %cst_64 {dimension_numbers = #tpu.dot_dimension_numbers<[1], [0], [0], [1], [0, 0, 1, 1], [], []>} : vector<64x32xbf16>, vector<32x32xbf16>, vector<64x32xf32> -> vector<64x32xf32>
    %171 = vector.extract_strided_slice %6 {offsets = [11, 0], sizes = [1, 32], strides = [1, 1]} : vector<12x32xf32> to vector<1x32xf32>
    %172 = vector.broadcast %171 : vector<1x32xf32> to vector<64x32xf32>
    %173 = arith.addf %170, %172 : vector<64x32xf32>
    %174 = arith.addf %127, %173 : vector<64x32xf32>
    %175 = vector.shape_cast %174 : vector<64x32xf32> to vector<1x64x32xf32>
    %176 = arith.truncf %175 : vector<1x64x32xf32> to vector<1x64x32xbf16>
    %c0_65 = arith.constant 0 : index
    %c0_66 = arith.constant 0 : index
    %c0_67 = arith.constant 0 : index
    %177 = vector.load %arg7[%c0_65, %c0_66, %c0_67] : memref<1x64x32xbf16, #tpu.memory_space<vmem>>, vector<1x64x32xbf16>
    tpu.vector_store %arg7[%c0_65, %c0_66, %c0_67], %176 {strides = array<i32>} : memref<1x64x32xbf16, #tpu.memory_space<vmem>>, vector<1x64x32xbf16>,
    return
  }
  func.func @transform_0(%arg0: i32) -> (i32, i32, i32) {
    %c0_i32 = arith.constant 0 : i32
    %c0_i32_0 = arith.constant 0 : i32
    %c0_i32_1 = arith.constant 0 : i32
    return %arg0, %c0_i32, %c0_i32_0 : i32, i32, i32
  }
  func.func @transform_1(%arg0: i32) -> (i32, i32, i32) {
    %c0_i32 = arith.constant 0 : i32
    %c0_i32_0 = arith.constant 0 : i32
    %c0_i32_1 = arith.constant 0 : i32
    return %arg0, %c0_i32, %c0_i32_0 : i32, i32, i32
  }
  func.func @transform_2(%arg0: i32) -> (i32, i32, i32) {
    %c0_i32 = arith.constant 0 : i32
    %c0_i32_0 = arith.constant 0 : i32
    %c0_i32_1 = arith.constant 0 : i32
    %c0_i32_2 = arith.constant 0 : i32
    return %c0_i32, %c0_i32_0, %c0_i32_1 : i32, i32, i32
  }
  func.func @transform_3(%arg0: i32) -> (i32, i32) {
    %c0_i32 = arith.constant 0 : i32
    %c0_i32_0 = arith.constant 0 : i32
    %c0_i32_1 = arith.constant 0 : i32
    return %c0_i32, %c0_i32_0 : i32, i32
  }
  func.func @transform_4(%arg0: i32) -> (i32, i32) {
    %c0_i32 = arith.constant 0 : i32
    %c0_i32_0 = arith.constant 0 : i32
    %c0_i32_1 = arith.constant 0 : i32
    return %c0_i32, %c0_i32_0 : i32, i32
  }
  func.func @transform_5(%arg0: i32) -> (i32, i32) {
    %c0_i32 = arith.constant 0 : i32
    %c0_i32_0 = arith.constant 0 : i32
    %c0_i32_1 = arith.constant 0 : i32
    return %c0_i32, %c0_i32_0 : i32, i32
  }
  func.func @transform_6(%arg0: i32) -> (i32, i32, i32) {
    %c0_i32 = arith.constant 0 : i32
    %c0_i32_0 = arith.constant 0 : i32
    %c0_i32_1 = arith.constant 0 : i32
    return %arg0, %c0_i32, %c0_i32_0 : i32, i32, i32
  }
}

</mosaic_0001>

<llo_original>
// kernel: tpu_custom_call.1
$region0: #{tpu_custom_call.1}
  #allocation0 [shape = 'u32[]', space=smem, size = 0x4, offset = 0x4, fixed_abs, tag = 'smem constant byte address 0x4 - core index']
  #allocation1 [shape = 'u32[144,128]{1,0:T(1,128)}', space=vmem, size = 0x12000, scoped, tag = 'internal scratch']
  %s0 = inlined_call_operand.vmem [shape: f32[2,64,32], index: 0, kind: input, shape index: {}]
  %s1 = inlined_call_operand.vmem [shape: f32[2,64,16], index: 1, kind: input, shape index: {}]
  %s2 = inlined_call_operand.vmem [shape: bf16[8,32,32], index: 2, kind: input, shape index: {}]
  %s3 = inlined_call_operand.vmem [shape: bf16[16,32], index: 3, kind: input, shape index: {}]
  %s4 = inlined_call_operand.vmem [shape: bf16[32,16], index: 4, kind: input, shape index: {}]
  %s5 = inlined_call_operand.vmem [shape: f32[12,32], index: 5, kind: input, shape index: {}]
  %s6 = inlined_call_operand.vmem [shape: bf16[2,64,32], index: 6, kind: output, shape index: {}]
  %s7 = sld [smem:[#allocation0]]
  $region57: #{tpu_custom_call.1} parent=0
    _
  %s9 = ssub.s32 1, %s7
  %s10 = scalar_select 0, %s9, %s7
  loop: start=0, step=1, limit=4
  $region2: #{tpu_custom_call.1} parent=0 // loop_pre_header
    _
  $region3: #{tpu_custom_call.1} parent=0 // loop_header
    %s12 = sphi 0, %s16
    %p13 = scmp.ge.s32.totalorder %s12, 4
    %s22 = sphi 0, %s24
    %s25 = sphi 0, %s22
    %s26 = sphi 0, %s25
    %s42 = sphi 0, %s26
    %s48 = sphi 0, %s50
    %s51 = sphi 0, %s48
    %s52 = sphi 0, %s51
    %s68 = sphi 0, %s52
    %s72 = sphi 0, %s72
    %s74 = sphi 0, %s72
    %s75 = sphi 0, %s74
    %s89 = sphi 0, %s75
    %s93 = sphi 0, %s93
    %s95 = sphi 0, %s93
    %s96 = sphi 0, %s95
    %s110 = sphi 0, %s96
    %s114 = sphi 0, %s114
    %s116 = sphi 0, %s114
    %s117 = sphi 0, %s116
    %s131 = sphi 0, %s117
    %s135 = sphi 0, %s135
    %s137 = sphi 0, %s135
    %s138 = sphi 0, %s137
    %s152 = sphi 0, %s138
    %s158 = sphi 0, %s160
    %s161 = sphi 0, %s158
    %s162 = sphi 0, %s161
    %s178 = sphi 0, %s162
  $region4: #{tpu_custom_call.1} parent=0 // loop_header_branch
    %15 = sbr.rel (%p13) target = $region8
  $region5: #{tpu_custom_call.1} parent=0 // loop_body
    %s17 = ssub.s32 %s12, 1
    %s18 = ssub.s32 %s12, 2
    %s19 = sadd.s32 %s12, 1
    %s20 = ssub.s32 %s12, %s19
    %p21 = scmp.eq.s32.totalorder %s20, 0
    %s23 = sadd.s32 %s22, 1
    %s24 = scalar_select %p21, %s22, %s23
    %p27 = pneg %p21
    %p28 = scmp.eq.s32.totalorder %s12, 1
    %p29 = por %p27, %p28
    %p30 = scmp.ne.s32.totalorder %s22, %s25
    %p31 = scmp.eq.s32.totalorder %s12, 0
    %p32 = por %p30, %p31
    %p33 = scmp.ne.s32.totalorder %s22, %s25
    %p34 = scmp.eq.s32.totalorder %s17, 1
    %p35 = por %p33, %p34
    %p36 = scmp.ne.s32.totalorder %s25, %s26
    %p37 = scmp.eq.s32.totalorder %s17, 0
    %p38 = por %p36, %p37
    %p39 = scmp.ne.s32.totalorder %s25, %s26
    %p40 = scmp.eq.s32.totalorder %s18, 1
    %p41 = por %p39, %p40
    %p43 = scmp.ne.s32.totalorder %s26, %s42
    %p44 = scmp.eq.s32.totalorder %s18, 0
    %p45 = por %p43, %p44
    %s46 = ssub.s32 %s12, %s19
    %p47 = scmp.eq.s32.totalorder %s46, 0
    %s49 = sadd.s32 %s48, 1
    %s50 = scalar_select %p47, %s48, %s49
    %p53 = pneg %p47
    %p54 = scmp.eq.s32.totalorder %s12, 1
    %p55 = por %p53, %p54
    %p56 = scmp.ne.s32.totalorder %s48, %s51
    %p57 = scmp.eq.s32.totalorder %s12, 0
    %p58 = por %p56, %p57
    %p59 = scmp.ne.s32.totalorder %s48, %s51
    %p60 = scmp.eq.s32.totalorder %s17, 1
    %p61 = por %p59, %p60
    %p62 = scmp.ne.s32.totalorder %s51, %s52
    %p63 = scmp.eq.s32.totalorder %s17, 0
    %p64 = por %p62, %p63
    %p65 = scmp.ne.s32.totalorder %s51, %s52
    %p66 = scmp.eq.s32.totalorder %s18, 1
    %p67 = por %p65, %p66
    %p69 = scmp.ne.s32.totalorder %s52, %s68
    %p70 = scmp.eq.s32.totalorder %s18, 0
    %p71 = por %p69, %p70
    %s73 = sadd.s32 %s72, 1
    %p76 = scmp.eq.s32.totalorder %s12, 1
    %p77 = scmp.ne.s32.totalorder %s72, %s74
    %p78 = scmp.eq.s32.totalorder %s12, 0
    %p79 = por %p77, %p78
    %p80 = scmp.ne.s32.totalorder %s72, %s74
    %p81 = scmp.eq.s32.totalorder %s17, 1
    %p82 = por %p80, %p81
    %p83 = scmp.ne.s32.totalorder %s74, %s75
    %p84 = scmp.eq.s32.totalorder %s17, 0
    %p85 = por %p83, %p84
    %p86 = scmp.ne.s32.totalorder %s74, %s75
    %p87 = scmp.eq.s32.totalorder %s18, 1
    %p88 = por %p86, %p87
    %p90 = scmp.ne.s32.totalorder %s75, %s89
    %p91 = scmp.eq.s32.totalorder %s18, 0
    %p92 = por %p90, %p91
    %s94 = sadd.s32 %s93, 1
    %p97 = scmp.eq.s32.totalorder %s12, 1
    %p98 = scmp.ne.s32.totalorder %s93, %s95
    %p99 = scmp.eq.s32.totalorder %s12, 0
    %p100 = por %p98, %p99
    %p101 = scmp.ne.s32.totalorder %s93, %s95
    %p102 = scmp.eq.s32.totalorder %s17, 1
    %p103 = por %p101, %p102
    %p104 = scmp.ne.s32.totalorder %s95, %s96
    %p105 = scmp.eq.s32.totalorder %s17, 0
    %p106 = por %p104, %p105
    %p107 = scmp.ne.s32.totalorder %s95, %s96
    %p108 = scmp.eq.s32.totalorder %s18, 1
    %p109 = por %p107, %p108
    %p111 = scmp.ne.s32.totalorder %s96, %s110
    %p112 = scmp.eq.s32.totalorder %s18, 0
    %p113 = por %p111, %p112
    %s115 = sadd.s32 %s114, 1
    %p118 = scmp.eq.s32.totalorder %s12, 1
    %p119 = scmp.ne.s32.totalorder %s114, %s116
    %p120 = scmp.eq.s32.totalorder %s12, 0
    %p121 = por %p119, %p120
    %p122 = scmp.ne.s32.totalorder %s114, %s116
    %p123 = scmp.eq.s32.totalorder %s17, 1
    %p124 = por %p122, %p123
    %p125 = scmp.ne.s32.totalorder %s116, %s117
    %p126 = scmp.eq.s32.totalorder %s17, 0
    %p127 = por %p125, %p126
    %p128 = scmp.ne.s32.totalorder %s116, %s117
    %p129 = scmp.eq.s32.totalorder %s18, 1
    %p130 = por %p128, %p129
    %p132 = scmp.ne.s32.totalorder %s117, %s131
    %p133 = scmp.eq.s32.totalorder %s18, 0
    %p134 = por %p132, %p133
    %s136 = sadd.s32 %s135, 1
    %p139 = scmp.eq.s32.totalorder %s12, 1
    %p140 = scmp.ne.s32.totalorder %s135, %s137
    %p141 = scmp.eq.s32.totalorder %s12, 0
    %p142 = por %p140, %p141
    %p143 = scmp.ne.s32.totalorder %s135, %s137
    %p144 = scmp.eq.s32.totalorder %s17, 1
    %p145 = por %p143, %p144
    %p146 = scmp.ne.s32.totalorder %s137, %s138
    %p147 = scmp.eq.s32.totalorder %s17, 0
    %p148 = por %p146, %p147
    %p149 = scmp.ne.s32.totalorder %s137, %s138
    %p150 = scmp.eq.s32.totalorder %s18, 1
    %p151 = por %p149, %p150
    %p153 = scmp.ne.s32.totalorder %s138, %s152
    %p154 = scmp.eq.s32.totalorder %s18, 0
    %p155 = por %p153, %p154
    %s156 = ssub.s32 %s12, %s19
    %p157 = scmp.eq.s32.totalorder %s156, 0
    %s159 = sadd.s32 %s158, 1
    %s160 = scalar_select %p157, %s158, %s159
    %p163 = pneg %p157
    %p164 = scmp.eq.s32.totalorder %s12, 1
    %p165 = por %p163, %p164
    %p166 = scmp.ne.s32.totalorder %s158, %s161
    %p167 = scmp.eq.s32.totalorder %s12, 0
    %p168 = por %p166, %p167
    %p169 = scmp.ne.s32.totalorder %s158, %s161
    %p170 = scmp.eq.s32.totalorder %s17, 1
    %p171 = por %p169, %p170
    %p172 = scmp.ne.s32.totalorder %s161, %s162
    %p173 = scmp.eq.s32.totalorder %s17, 0
    %p174 = por %p172, %p173
    %p175 = scmp.ne.s32.totalorder %s161, %s162
    %p176 = scmp.eq.s32.totalorder %s18, 1
    %p177 = por %p175, %p176
    %p179 = scmp.ne.s32.totalorder %s162, %s178
    %p180 = scmp.eq.s32.totalorder %s18, 0
    %p181 = por %p179, %p180
    %p182 = scmp.le.s32.totalorder 1, %s12
    %p183 = scmp.lt.s32.totalorder %s12, 3
    %p184 = pnand %p182, %p183
    %p185 = pneg %p184
    // Predicated region
    $region9: #{tpu_custom_call.1} parent=5 // pred_check
      _
    $region10: #{tpu_custom_call.1} parent=5 // pred_check_branch
      %187 = sbr.rel (%p184) target = $region12
    $region11: #{tpu_custom_call.1} parent=5 // pred_region
      %s188 = ssub.s32 %s12, 1
      // Predicated region
      $region13: #{tpu_custom_call.1} parent=11 // pred_check
        %p189 = pneg %p85
      $region14: #{tpu_custom_call.1} parent=11 // pred_check_branch
        %191 = sbr.rel (%p189) target = $region16
      $region15: #{tpu_custom_call.1} parent=11 // pred_region
        _
      $region16: #{tpu_custom_call.1} parent=11 // pred_fallthru
        _
      // Predicated region
      $region17: #{tpu_custom_call.1} parent=11 // pred_check
        %p192 = pneg %p106
      $region18: #{tpu_custom_call.1} parent=11 // pred_check_branch
        %194 = sbr.rel (%p192) target = $region20
      $region19: #{tpu_custom_call.1} parent=11 // pred_region
        _
      $region20: #{tpu_custom_call.1} parent=11 // pred_fallthru
        _
      // Predicated region
      $region21: #{tpu_custom_call.1} parent=11 // pred_check
        %p195 = pneg %p127
      $region22: #{tpu_custom_call.1} parent=11 // pred_check_branch
        %197 = sbr.rel (%p195) target = $region24
      $region23: #{tpu_custom_call.1} parent=11 // pred_region
        _
      $region24: #{tpu_custom_call.1} parent=11 // pred_fallthru
        _
      // Predicated region
      $region25: #{tpu_custom_call.1} parent=11 // pred_check
        %p198 = pneg %p148
      $region26: #{tpu_custom_call.1} parent=11 // pred_check_branch
        %200 = sbr.rel (%p198) target = $region28
      $region27: #{tpu_custom_call.1} parent=11 // pred_region
        _
      $region28: #{tpu_custom_call.1} parent=11 // pred_fallthru
        _
    $region12: #{tpu_custom_call.1} parent=5 // pred_fallthru
      _
    %p201 = scmp.lt.s32.totalorder %s12, 2
    // Predicated region
    $region29: #{tpu_custom_call.1} parent=5 // pred_check
      %p202 = pneg %p201
    $region30: #{tpu_custom_call.1} parent=5 // pred_check_branch
      %204 = sbr.rel (%p202) target = $region32
    $region31: #{tpu_custom_call.1} parent=5 // pred_region
      // Predicated region
      $region33: #{tpu_custom_call.1} parent=31 // pred_check
        %p205 = pneg %p32
      $region34: #{tpu_custom_call.1} parent=31 // pred_check_branch
        %207 = sbr.rel (%p205) target = $region36
      $region35: #{tpu_custom_call.1} parent=31 // pred_region
        %p208 = scmp.lt.s32.totalorder %s12, 1
        %s209 = scalar_select %p208, %s12, 1
        %s210 = smul.addr %s209, 8
        %s211 = smul.addr %s210, 8
        %s212 = scalar_lea.vmem %s0, %s211
      $region36: #{tpu_custom_call.1} parent=31 // pred_fallthru
        _
      // Predicated region
      $region37: #{tpu_custom_call.1} parent=31 // pred_check
        %p213 = pneg %p58
      $region38: #{tpu_custom_call.1} parent=31 // pred_check_branch
        %215 = sbr.rel (%p213) target = $region40
      $region39: #{tpu_custom_call.1} parent=31 // pred_region
        %p216 = scmp.lt.s32.totalorder %s12, 1
        %s217 = scalar_select %p216, %s12, 1
        %s218 = smul.addr %s217, 8
        %s219 = smul.addr %s218, 8
        %s220 = scalar_lea.vmem %s1, %s219
      $region40: #{tpu_custom_call.1} parent=31 // pred_fallthru
        _
    $region32: #{tpu_custom_call.1} parent=5 // pred_fallthru
      _
    %p221 = scmp.le.s32.totalorder 1, %s12
    %p222 = scmp.lt.s32.totalorder %s12, 3
    %p223 = pnand %p221, %p222
    %p224 = pneg %p223
    // Predicated region
    $region41: #{tpu_custom_call.1} parent=5 // pred_check
      _
    $region42: #{tpu_custom_call.1} parent=5 // pred_check_branch
      %226 = sbr.rel (%p223) target = $region44
    $region43: #{tpu_custom_call.1} parent=5 // pred_region
      %s227 = ssub.s32 %s12, 1
      %p228 = scmp.lt.s32.totalorder %s17, 1
      %s229 = scalar_select %p228, %s17, 1
      %s230 = smul.addr %s229, 8
      %s231 = smul.addr %s230, 8
      %s232 = scalar_lea.vmem %s0, %s231
      %p233 = pneg %p38
      %p234 = pneg %p35
      %p235 = scmp.lt.s32.totalorder %s17, 1
      %s236 = scalar_select %p235, %s17, 1
      %s237 = smul.addr %s236, 8
      %s238 = smul.addr %s237, 8
      %s239 = scalar_lea.vmem %s1, %s238
      %p240 = pneg %p64
      %p241 = pneg %p61
      %p242 = pneg %p85
      %p243 = pneg %p82
      %p244 = pneg %p106
      %p245 = pneg %p103
      %p246 = pneg %p127
      %p247 = pneg %p124
      %p248 = pneg %p148
      %p249 = pneg %p145
      %p250 = pneg %p174
      %p251 = pneg %p171
      %p252 = scmp.lt.s32.totalorder %s17, 1
      %s253 = scalar_select %p252, %s17, 1
      %s254 = smul.addr %s253, 8
      %s255 = smul.addr %s254, 4
      %s256 = scalar_lea.vmem %s6, %s255
      %p257 = scmp.lt.s32.totalorder %s17, 1
      %s258 = scalar_select %p257, %s17, 1
      %s259 = smul.addr %s258, 8
      %s260 = smul.addr %s259, 8
      %s261 = scalar_lea.vmem %s0, %s260
      %p262 = scmp.lt.s32.totalorder %s17, 1
      %s263 = scalar_select %p262, %s17, 1
      %s264 = smul.addr %s263, 8
      %s265 = smul.addr %s264, 8
      %s266 = scalar_lea.vmem %s1, %s265
      %p267 = scmp.lt.s32.totalorder %s17, 1
      %s268 = scalar_select %p267, %s17, 1
      %s269 = smul.addr %s268, 8
      %s270 = smul.addr %s269, 4
      %s271 = scalar_lea.vmem %s6, %s270
      %v273 = vld [vmem:[%s261] sm:$0xff]
      %v274 = vld [vmem:[%s261 + $0x8] sm:$0xff]
      %v275 = vld [vmem:[%s261 + $0x10] sm:$0xff]
      %v276 = vld [vmem:[%s261 + $0x18] sm:$0xff]
      %v277 = vld [vmem:[%s261 + $0x20] sm:$0xff]
      %v278 = vld [vmem:[%s261 + $0x28] sm:$0xff]
      %v279 = vld [vmem:[%s261 + $0x30] sm:$0xff]
      %v280 = vld [vmem:[%s261 + $0x38] sm:$0xff]
      %v281 = vpack.c.bf16 %v274, %v273
      %v282 = vpack.c.bf16 %v276, %v275
      %v283 = vpack.c.bf16 %v278, %v277
      %v284 = vpack.c.bf16 %v280, %v279
      %v285 = vld [vmem:[%s266] sm:$0xff]
      %v286 = vld [vmem:[%s266 + $0x8] sm:$0xff]
      %v287 = vld [vmem:[%s266 + $0x10] sm:$0xff]
      %v288 = vld [vmem:[%s266 + $0x18] sm:$0xff]
      %v289 = vld [vmem:[%s266 + $0x20] sm:$0xff]
      %v290 = vld [vmem:[%s266 + $0x28] sm:$0xff]
      %v291 = vld [vmem:[%s266 + $0x30] sm:$0xff]
      %v292 = vld [vmem:[%s266 + $0x38] sm:$0xff]
      %v293 = vpack.c.bf16 %v286, %v285
      %v294 = vpack.c.bf16 %v288, %v287
      %v295 = vpack.c.bf16 %v290, %v289
      %v296 = vpack.c.bf16 %v292, %v291
      %v297 = vld [vmem:[%s5] sm:$0xff]
      %v298 = vld [vmem:[%s5 + $0x8] sm:$0xf]
      %v299 = vld [vmem:[%s2] sm:$0xf]
      %v300 = vld [vmem:[%s2 + $0x4] sm:$0xf]
      %v301 = vld [vmem:[%s2 + $0x8] sm:$0xf]
      %v302 = vld [vmem:[%s2 + $0xc] sm:$0xf]
      %v303 = vld [vmem:[%s3] sm:$0xf]
      %v304 = vld [vmem:[%s3 + $0x4] sm:$0xf]
      %v307 = vunpack.c.l.b16 %v303
      %v308 = vunpack.c.l.b16 %v304
      %v309 = vpack.c.b16 %v308, %v307
      %vm311 = vcmask 130048
      %v313 = vsel %vm311, %v293, 0
      %v316 = vsel %vm311, %v294, 0
      %v319 = vsel %vm311, %v295, 0
      %v322 = vsel %vm311, %v296, 0
      %324 = vmatprep.subr.bf16.mxu0 0
      %325 = vmatpush1.bf16.msra.mxu0 %v309
      %326 = vmatprep.subr.bf16.mxu0 0
      %327 = vmatpush1.bf16.msra.mxu0 0
      %328 = vmatprep.subr.bf16.mxu0 0
      %329 = vmatpush1.bf16.msra.mxu0 0
      %330 = vmatprep.subr.bf16.mxu0 0
      %331 = vmatpush1.bf16.msra.mxu0 0
      %332 = vmatprep.subr.bf16.mxu0 0
      %333 = vmatpush1.bf16.msra.mxu0 0
      %334 = vmatprep.subr.bf16.mxu0 0
      %335 = vmatpush1.bf16.msra.mxu0 0
      %336 = vmatprep.subr.bf16.mxu0 0
      %337 = vmatpush1.bf16.msra.mxu0 0
      %338 = vmatprep.subr.bf16.mxu0 0
      %339 = vmatpush1.bf16.msra.mxu0 0
      %340 = vmatprep.subr.bf16.mxu0 0
      %341 = vmatpush1.bf16.msra.mxu0 0
      %342 = vmatprep.subr.bf16.mxu0 0
      %343 = vmatpush1.bf16.msra.mxu0 0
      %344 = vmatprep.subr.bf16.mxu0 0
      %345 = vmatpush1.bf16.msra.mxu0 0
      %346 = vmatprep.subr.bf16.mxu0 0
      %347 = vmatpush1.bf16.msra.mxu0 0
      %348 = vmatprep.subr.bf16.mxu0 0
      %349 = vmatpush1.bf16.msra.mxu0 0
      %350 = vmatprep.subr.bf16.mxu0 0
      %351 = vmatpush1.bf16.msra.mxu0 0
      %352 = vmatprep.subr.bf16.mxu0 0
      %353 = vmatpush1.bf16.msra.mxu0 0
      %354 = vmatprep.subr.bf16.mxu0 0
      %355 = vmatpush1.bf16.msra.mxu0 0
      %356 = vmatprep.mubr.bf16.mxu0 0
      %357 = vmatmul.mubr.bf16.gmra.mrb[0].mxu0 %v313
      %v358 = vpop.f32.mrb[0].mxu0
      %v359 = vadd.f32 0.0, %v358
      %v360 = vpop.f32.mrb[0].mxu0
      %v361 = vpop.f32.mrb[0].mxu0
      %v362 = vadd.f32 0.0, %v361
      %v363 = vpop.f32.mrb[0].mxu0
      %364 = vmatprep.mubr.bf16.mxu0 0
      %365 = vmatmul.mubr.bf16.gmra.mrb[0].mxu0 %v316
      %v366 = vpop.f32.mrb[0].mxu0
      %v367 = vadd.f32 0.0, %v366
      %v368 = vpop.f32.mrb[0].mxu0
      %v369 = vpop.f32.mrb[0].mxu0
      %v370 = vadd.f32 0.0, %v369
      %v371 = vpop.f32.mrb[0].mxu0
      %372 = vmatprep.mubr.bf16.mxu0 0
      %373 = vmatmul.mubr.bf16.gmra.mrb[0].mxu0 %v319
      %v374 = vpop.f32.mrb[0].mxu0
      %v375 = vadd.f32 0.0, %v374
      %v376 = vpop.f32.mrb[0].mxu0
      %v377 = vpop.f32.mrb[0].mxu0
      %v378 = vadd.f32 0.0, %v377
      %v379 = vpop.f32.mrb[0].mxu0
      %380 = vmatprep.mubr.bf16.mxu0 0
      %381 = vmatmul.mubr.bf16.gmra.mrb[0].mxu0 %v322
      %v382 = vpop.f32.mrb[0].mxu0
      %v383 = vadd.f32 0.0, %v382
      %v384 = vpop.f32.mrb[0].mxu0
      %v385 = vpop.f32.mrb[0].mxu0
      %v386 = vadd.f32 0.0, %v385
      %v387 = vpop.f32.mrb[0].mxu0
      %388 = vdwg.mxu0
      %v393 = vunpack.c.l.b16 %v299
      %v394 = vunpack.c.l.b16 %v300
      %v395 = vunpack.c.l.b16 %v301
      %v396 = vunpack.c.l.b16 %v302
      %v397 = vpack.c.b16 %v394, %v393
      %v398 = vpack.c.b16 %v396, %v395
      %vm401 = vcmask 261120
      %v403 = vsel %vm401, %v281, 0
      %v406 = vsel %vm401, %v282, 0
      %v409 = vsel %vm401, %v283, 0
      %v412 = vsel %vm401, %v284, 0
      %414 = vmatprep.subr.bf16.mxu0 0
      %415 = vmatpush1.bf16.msra.mxu0 %v397
      %416 = vmatprep.subr.bf16.mxu0 0
      %417 = vmatpush1.bf16.msra.mxu0 %v398
      %418 = vmatprep.subr.bf16.mxu0 0
      %419 = vmatpush1.bf16.msra.mxu0 0
      %420 = vmatprep.subr.bf16.mxu0 0
      %421 = vmatpush1.bf16.msra.mxu0 0
      %422 = vmatprep.subr.bf16.mxu0 0
      %423 = vmatpush1.bf16.msra.mxu0 0
      %424 = vmatprep.subr.bf16.mxu0 0
      %425 = vmatpush1.bf16.msra.mxu0 0
      %426 = vmatprep.subr.bf16.mxu0 0
      %427 = vmatpush1.bf16.msra.mxu0 0
      %428 = vmatprep.subr.bf16.mxu0 0
      %429 = vmatpush1.bf16.msra.mxu0 0
      %430 = vmatprep.subr.bf16.mxu0 0
      %431 = vmatpush1.bf16.msra.mxu0 0
      %432 = vmatprep.subr.bf16.mxu0 0
      %433 = vmatpush1.bf16.msra.mxu0 0
      %434 = vmatprep.subr.bf16.mxu0 0
      %435 = vmatpush1.bf16.msra.mxu0 0
      %436 = vmatprep.subr.bf16.mxu0 0
      %437 = vmatpush1.bf16.msra.mxu0 0
      %438 = vmatprep.subr.bf16.mxu0 0
      %439 = vmatpush1.bf16.msra.mxu0 0
      %440 = vmatprep.subr.bf16.mxu0 0
      %441 = vmatpush1.bf16.msra.mxu0 0
      %442 = vmatprep.subr.bf16.mxu0 0
      %443 = vmatpush1.bf16.msra.mxu0 0
      %444 = vmatprep.subr.bf16.mxu0 0
      %445 = vmatpush1.bf16.msra.mxu0 0
      %446 = vmatprep.mubr.bf16.mxu0 0
      %447 = vmatmul.mubr.bf16.gmra.mrb[0].mxu0 %v403
      %v448 = vpop.f32.mrb[0].mxu0
      %v449 = vadd.f32 %v359, %v448
      %v450 = vpop.f32.mrb[0].mxu0
      %v451 = vpop.f32.mrb[0].mxu0
      %v452 = vadd.f32 %v362, %v451
      %v453 = vpop.f32.mrb[0].mxu0
      %454 = vmatprep.mubr.bf16.mxu0 0
      %455 = vmatmul.mubr.bf16.gmra.mrb[0].mxu0 %v406
      %v456 = vpop.f32.mrb[0].mxu0
      %v457 = vadd.f32 %v367, %v456
      %v458 = vpop.f32.mrb[0].mxu0
      %v459 = vpop.f32.mrb[0].mxu0
      %v460 = vadd.f32 %v370, %v459
      %v461 = vpop.f32.mrb[0].mxu0
      %462 = vmatprep.mubr.bf16.mxu0 0
      %463 = vmatmul.mubr.bf16.gmra.mrb[0].mxu0 %v409
      %v464 = vpop.f32.mrb[0].mxu0
      %v465 = vadd.f32 %v375, %v464
      %v466 = vpop.f32.mrb[0].mxu0
      %v467 = vpop.f32.mrb[0].mxu0
      %v468 = vadd.f32 %v378, %v467
      %v469 = vpop.f32.mrb[0].mxu0
      %470 = vmatprep.mubr.bf16.mxu0 0
      %471 = vmatmul.mubr.bf16.gmra.mrb[0].mxu0 %v412
      %v472 = vpop.f32.mrb[0].mxu0
      %v473 = vadd.f32 %v383, %v472
      %v474 = vpop.f32.mrb[0].mxu0
      %v475 = vpop.f32.mrb[0].mxu0
      %v476 = vadd.f32 %v386, %v475
      %v477 = vpop.f32.mrb[0].mxu0
      %478 = vdwg.mxu0
      %v479 = vlaneseq
      %v480 = vshrl.u32 %v479, 7
      %v481 = vsub.s32 0, %v480
      %v482 = vrot.slane %v297, %v481
      %v483 = vadd.f32 %v449, %v482
      %v484 = vadd.f32 %v452, %v482
      %v485 = vadd.f32 %v457, %v482
      %v486 = vadd.f32 %v460, %v482
      %v487 = vadd.f32 %v465, %v482
      %v488 = vadd.f32 %v468, %v482
      %v489 = vadd.f32 %v473, %v482
      %v490 = vadd.f32 %v476, %v482
      %v491 = vmul.f32 %v483, 0.5
      %v492 = vmul.f32 %v484, 0.5
      %v493 = vmul.f32 %v485, 0.5
      %v494 = vmul.f32 %v486, 0.5
      %v495 = vmul.f32 %v487, 0.5
      %v496 = vmul.f32 %v488, 0.5
      %v497 = vmul.f32 %v489, 0.5
      %v498 = vmul.f32 %v490, 0.5
      %v499 = vrcp.pop 1.4142135
      %v500 = vmul.f32 %v483, %v499
      %v501 = vmul.f32 %v484, %v499
      %v502 = vmul.f32 %v485, %v499
      %v503 = vmul.f32 %v486, %v499
      %v504 = vmul.f32 %v487, %v499
      %v505 = vmul.f32 %v488, %v499
      %v506 = vmul.f32 %v489, %v499
      %v507 = vmul.f32 %v490, %v499
      %v508 = verf.f32.pop %v500
      %v509 = verf.f32.pop %v501
      %v510 = verf.f32.pop %v502
      %v511 = verf.f32.pop %v503
      %v512 = verf.f32.pop %v504
      %v513 = verf.f32.pop %v505
      %v514 = verf.f32.pop %v506
      %v515 = verf.f32.pop %v507
      %v516 = vadd.f32 %v508, 1.0
      %v517 = vadd.f32 %v509, 1.0
      %v518 = vadd.f32 %v510, 1.0
      %v519 = vadd.f32 %v511, 1.0
      %v520 = vadd.f32 %v512, 1.0
      %v521 = vadd.f32 %v513, 1.0
      %v522 = vadd.f32 %v514, 1.0
      %v523 = vadd.f32 %v515, 1.0
      %v524 = vmul.f32 %v491, %v516
      %v525 = vmul.f32 %v492, %v517
      %v526 = vmul.f32 %v493, %v518
      %v527 = vmul.f32 %v494, %v519
      %v528 = vmul.f32 %v495, %v520
      %v529 = vmul.f32 %v496, %v521
      %v530 = vmul.f32 %v497, %v522
      %v531 = vmul.f32 %v498, %v523
      %v532 = vpack.c.bf16 %v525, %v524
      %v533 = vpack.c.bf16 %v527, %v526
      %v534 = vpack.c.bf16 %v529, %v528
      %v535 = vpack.c.bf16 %v531, %v530
      %s536 = scalar_lea.vmem %s2, 16
      %v537 = vld [vmem:[%s536] sm:$0xf]
      %v538 = vld [vmem:[%s536 + $0x4] sm:$0xf]
      %v539 = vld [vmem:[%s536 + $0x8] sm:$0xf]
      %v540 = vld [vmem:[%s536 + $0xc] sm:$0xf]
      %v541 = vlaneseq
      %v542 = vshrl.u32 %v541, 7
      %v543 = vsub.s32 1, %v542
      %v544 = vrot.slane %v297, %v543
      %v549 = vunpack.c.l.b16 %v537
      %v550 = vunpack.c.l.b16 %v538
      %v551 = vunpack.c.l.b16 %v539
      %v552 = vunpack.c.l.b16 %v540
      %v553 = vpack.c.b16 %v550, %v549
      %v554 = vpack.c.b16 %v552, %v551
      %v558 = vsel %vm401, %v532, 0
      %v561 = vsel %vm401, %v533, 0
      %v564 = vsel %vm401, %v534, 0
      %v567 = vsel %vm401, %v535, 0
      %569 = vmatprep.subr.bf16.mxu0 0
      %570 = vmatpush1.bf16.msra.mxu0 %v553
      %571 = vmatprep.subr.bf16.mxu0 0
      %572 = vmatpush1.bf16.msra.mxu0 %v554
      %573 = vmatprep.subr.bf16.mxu0 0
      %574 = vmatpush1.bf16.msra.mxu0 0
      %575 = vmatprep.subr.bf16.mxu0 0
      %576 = vmatpush1.bf16.msra.mxu0 0
      %577 = vmatprep.subr.bf16.mxu0 0
      %578 = vmatpush1.bf16.msra.mxu0 0
      %579 = vmatprep.subr.bf16.mxu0 0
      %580 = vmatpush1.bf16.msra.mxu0 0
      %581 = vmatprep.subr.bf16.mxu0 0
      %582 = vmatpush1.bf16.msra.mxu0 0
      %583 = vmatprep.subr.bf16.mxu0 0
      %584 = vmatpush1.bf16.msra.mxu0 0
      %585 = vmatprep.subr.bf16.mxu0 0
      %586 = vmatpush1.bf16.msra.mxu0 0
      %587 = vmatprep.subr.bf16.mxu0 0
      %588 = vmatpush1.bf16.msra.mxu0 0
      %589 = vmatprep.subr.bf16.mxu0 0
      %590 = vmatpush1.bf16.msra.mxu0 0
      %591 = vmatprep.subr.bf16.mxu0 0
      %592 = vmatpush1.bf16.msra.mxu0 0
      %593 = vmatprep.subr.bf16.mxu0 0
      %594 = vmatpush1.bf16.msra.mxu0 0
      %595 = vmatprep.subr.bf16.mxu0 0
      %596 = vmatpush1.bf16.msra.mxu0 0
      %597 = vmatprep.subr.bf16.mxu0 0
      %598 = vmatpush1.bf16.msra.mxu0 0
      %599 = vmatprep.subr.bf16.mxu0 0
      %600 = vmatpush1.bf16.msra.mxu0 0
      %601 = vmatprep.mubr.bf16.mxu0 0
      %602 = vmatmul.mubr.bf16.gmra.mrb[0].mxu0 %v558
      %v603 = vpop.f32.mrb[0].mxu0
      %v604 = vadd.f32 %v544, %v603
      %v605 = vpop.f32.mrb[0].mxu0
      %v606 = vpop.f32.mrb[0].mxu0
      %v607 = vadd.f32 %v544, %v606
      %v608 = vpop.f32.mrb[0].mxu0
      %609 = vmatprep.mubr.bf16.mxu0 0
      %610 = vmatmul.mubr.bf16.gmra.mrb[0].mxu0 %v561
      %v611 = vpop.f32.mrb[0].mxu0
      %v612 = vadd.f32 %v544, %v611
      %v613 = vpop.f32.mrb[0].mxu0
      %v614 = vpop.f32.mrb[0].mxu0
      %v615 = vadd.f32 %v544, %v614
      %v616 = vpop.f32.mrb[0].mxu0
      %617 = vmatprep.mubr.bf16.mxu0 0
      %618 = vmatmul.mubr.bf16.gmra.mrb[0].mxu0 %v564
      %v619 = vpop.f32.mrb[0].mxu0
      %v620 = vadd.f32 %v544, %v619
      %v621 = vpop.f32.mrb[0].mxu0
      %v622 = vpop.f32.mrb[0].mxu0
      %v623 = vadd.f32 %v544, %v622
      %v624 = vpop.f32.mrb[0].mxu0
      %625 = vmatprep.mubr.bf16.mxu0 0
      %626 = vmatmul.mubr.bf16.gmra.mrb[0].mxu0 %v567
      %v627 = vpop.f32.mrb[0].mxu0
      %v628 = vadd.f32 %v544, %v627
      %v629 = vpop.f32.mrb[0].mxu0
      %v630 = vpop.f32.mrb[0].mxu0
      %v631 = vadd.f32 %v544, %v630
      %v632 = vpop.f32.mrb[0].mxu0
      %633 = vdwg.mxu0
      %v634 = vsel %vm401, %v604, 0.0
      %635 = vadd.xlane.f32.xlu0 %v634
      %v636 = vpop.xlane.xlu0 %635
      %v637 = vsel %vm401, %v607, 0.0
      %638 = vadd.xlane.f32.xlu0 %v637
      %v639 = vpop.xlane.xlu0 %638
      %v640 = vsel %vm401, %v612, 0.0
      %641 = vadd.xlane.f32.xlu0 %v640
      %v642 = vpop.xlane.xlu0 %641
      %v643 = vsel %vm401, %v615, 0.0
      %644 = vadd.xlane.f32.xlu0 %v643
      %v645 = vpop.xlane.xlu0 %644
      %v646 = vsel %vm401, %v620, 0.0
      %647 = vadd.xlane.f32.xlu0 %v646
      %v648 = vpop.xlane.xlu0 %647
      %v649 = vsel %vm401, %v623, 0.0
      %650 = vadd.xlane.f32.xlu0 %v649
      %v651 = vpop.xlane.xlu0 %650
      %v652 = vsel %vm401, %v628, 0.0
      %653 = vadd.xlane.f32.xlu0 %v652
      %v654 = vpop.xlane.xlu0 %653
      %v655 = vsel %vm401, %v631, 0.0
      %656 = vadd.xlane.f32.xlu0 %v655
      %v657 = vpop.xlane.xlu0 %656
      %v658 = vrcp.pop 32.0
      %v659 = vmul.f32 %v636, %v658
      %v660 = vmul.f32 %v639, %v658
      %v661 = vmul.f32 %v642, %v658
      %v662 = vmul.f32 %v645, %v658
      %v663 = vmul.f32 %v648, %v658
      %v664 = vmul.f32 %v651, %v658
      %v665 = vmul.f32 %v654, %v658
      %v666 = vmul.f32 %v657, %v658
      %v667 = vsub.f32 %v604, %v659
      %v668 = vsub.f32 %v607, %v660
      %v669 = vsub.f32 %v612, %v661
      %v670 = vsub.f32 %v615, %v662
      %v671 = vsub.f32 %v620, %v663
      %v672 = vsub.f32 %v623, %v664
      %v673 = vsub.f32 %v628, %v665
      %v674 = vsub.f32 %v631, %v666
      %v675 = vmul.f32 %v667, %v667
      %v676 = vmul.f32 %v668, %v668
      %v677 = vmul.f32 %v669, %v669
      %v678 = vmul.f32 %v670, %v670
      %v679 = vmul.f32 %v671, %v671
      %v680 = vmul.f32 %v672, %v672
      %v681 = vmul.f32 %v673, %v673
      %v682 = vmul.f32 %v674, %v674
      %v683 = vsel %vm401, %v675, 0.0
      %684 = vadd.xlane.f32.xlu0 %v683
      %v685 = vpop.xlane.xlu0 %684
      %v686 = vsel %vm401, %v676, 0.0
      %687 = vadd.xlane.f32.xlu0 %v686
      %v688 = vpop.xlane.xlu0 %687
      %v689 = vsel %vm401, %v677, 0.0
      %690 = vadd.xlane.f32.xlu0 %v689
      %v691 = vpop.xlane.xlu0 %690
      %v692 = vsel %vm401, %v678, 0.0
      %693 = vadd.xlane.f32.xlu0 %v692
      %v694 = vpop.xlane.xlu0 %693
      %v695 = vsel %vm401, %v679, 0.0
      %696 = vadd.xlane.f32.xlu0 %v695
      %v697 = vpop.xlane.xlu0 %696
      %v698 = vsel %vm401, %v680, 0.0
      %699 = vadd.xlane.f32.xlu0 %v698
      %v700 = vpop.xlane.xlu0 %699
      %v701 = vsel %vm401, %v681, 0.0
      %702 = vadd.xlane.f32.xlu0 %v701
      %v703 = vpop.xlane.xlu0 %702
      %v704 = vsel %vm401, %v682, 0.0
      %705 = vadd.xlane.f32.xlu0 %v704
      %v706 = vpop.xlane.xlu0 %705
      %v707 = vmul.f32 %v685, %v658
      %v708 = vmul.f32 %v688, %v658
      %v709 = vmul.f32 %v691, %v658
      %v710 = vmul.f32 %v694, %v658
      %v711 = vmul.f32 %v697, %v658
      %v712 = vmul.f32 %v700, %v658
      %v713 = vmul.f32 %v703, %v658
      %v714 = vmul.f32 %v706, %v658
      %v715 = vadd.f32 %v707, 1e-05
      %v716 = vadd.f32 %v708, 1e-05
      %v717 = vadd.f32 %v709, 1e-05
      %v718 = vadd.f32 %v710, 1e-05
      %v719 = vadd.f32 %v711, 1e-05
      %v720 = vadd.f32 %v712, 1e-05
      %v721 = vadd.f32 %v713, 1e-05
      %v722 = vadd.f32 %v714, 1e-05
      %v723 = vrsqrt.pop %v715
      %v724 = vrsqrt.pop %v716
      %v725 = vrsqrt.pop %v717
      %v726 = vrsqrt.pop %v718
      %v727 = vrsqrt.pop %v719
      %v728 = vrsqrt.pop %v720
      %v729 = vrsqrt.pop %v721
      %v730 = vrsqrt.pop %v722
      %v731 = vmul.f32 %v667, %v723
      %v732 = vmul.f32 %v668, %v724
      %v733 = vmul.f32 %v669, %v725
      %v734 = vmul.f32 %v670, %v726
      %v735 = vmul.f32 %v671, %v727
      %v736 = vmul.f32 %v672, %v728
      %v737 = vmul.f32 %v673, %v729
      %v738 = vmul.f32 %v674, %v730
      %v739 = vlaneseq
      %v740 = vshrl.u32 %v739, 7
      %v741 = vsub.s32 2, %v740
      %v742 = vrot.slane %v297, %v741
      %v743 = vmul.f32 %v731, %v742
      %v744 = vmul.f32 %v732, %v742
      %v745 = vmul.f32 %v733, %v742
      %v746 = vmul.f32 %v734, %v742
      %v747 = vmul.f32 %v735, %v742
      %v748 = vmul.f32 %v736, %v742
      %v749 = vmul.f32 %v737, %v742
      %v750 = vmul.f32 %v738, %v742
      %v751 = vlaneseq
      %v752 = vshrl.u32 %v751, 7
      %v753 = vsub.s32 3, %v752
      %v754 = vrot.slane %v297, %v753
      %v755 = vadd.f32 %v743, %v754
      %v756 = vadd.f32 %v744, %v754
      %v757 = vadd.f32 %v745, %v754
      %v758 = vadd.f32 %v746, %v754
      %v759 = vadd.f32 %v747, %v754
      %v760 = vadd.f32 %v748, %v754
      %v761 = vadd.f32 %v749, %v754
      %v762 = vadd.f32 %v750, %v754
      %v763 = vpack.c.bf16 %v756, %v755
      %v764 = vpack.c.bf16 %v758, %v757
      %v765 = vpack.c.bf16 %v760, %v759
      %v766 = vpack.c.bf16 %v762, %v761
      %s767 = scalar_lea.vmem %s2, 32
      %v768 = vld [vmem:[%s767] sm:$0xf]
      %v769 = vld [vmem:[%s767 + $0x4] sm:$0xf]
      %v770 = vld [vmem:[%s767 + $0x8] sm:$0xf]
      %v771 = vld [vmem:[%s767 + $0xc] sm:$0xf]
      %v772 = vlaneseq
      %v773 = vshrl.u32 %v772, 7
      %v774 = vsub.s32 4, %v773
      %v775 = vrot.slane %v297, %v774
      %v780 = vunpack.c.l.b16 %v768
      %v781 = vunpack.c.l.b16 %v769
      %v782 = vunpack.c.l.b16 %v770
      %v783 = vunpack.c.l.b16 %v771
      %v784 = vpack.c.b16 %v781, %v780
      %v785 = vpack.c.b16 %v783, %v782
      %v789 = vsel %vm401, %v763, 0
      %v792 = vsel %vm401, %v764, 0
      %v795 = vsel %vm401, %v765, 0
      %v798 = vsel %vm401, %v766, 0
      %800 = vmatprep.subr.bf16.mxu0 0
      %801 = vmatpush1.bf16.msra.mxu0 %v784
      %802 = vmatprep.subr.bf16.mxu0 0
      %803 = vmatpush1.bf16.msra.mxu0 %v785
      %804 = vmatprep.subr.bf16.mxu0 0
      %805 = vmatpush1.bf16.msra.mxu0 0
      %806 = vmatprep.subr.bf16.mxu0 0
      %807 = vmatpush1.bf16.msra.mxu0 0
      %808 = vmatprep.subr.bf16.mxu0 0
      %809 = vmatpush1.bf16.msra.mxu0 0
      %810 = vmatprep.subr.bf16.mxu0 0
      %811 = vmatpush1.bf16.msra.mxu0 0
      %812 = vmatprep.subr.bf16.mxu0 0
      %813 = vmatpush1.bf16.msra.mxu0 0
      %814 = vmatprep.subr.bf16.mxu0 0
      %815 = vmatpush1.bf16.msra.mxu0 0
      %816 = vmatprep.subr.bf16.mxu0 0
      %817 = vmatpush1.bf16.msra.mxu0 0
      %818 = vmatprep.subr.bf16.mxu0 0
      %819 = vmatpush1.bf16.msra.mxu0 0
      %820 = vmatprep.subr.bf16.mxu0 0
      %821 = vmatpush1.bf16.msra.mxu0 0
      %822 = vmatprep.subr.bf16.mxu0 0
      %823 = vmatpush1.bf16.msra.mxu0 0
      %824 = vmatprep.subr.bf16.mxu0 0
      %825 = vmatpush1.bf16.msra.mxu0 0
      %826 = vmatprep.subr.bf16.mxu0 0
      %827 = vmatpush1.bf16.msra.mxu0 0
      %828 = vmatprep.subr.bf16.mxu0 0
      %829 = vmatpush1.bf16.msra.mxu0 0
      %830 = vmatprep.subr.bf16.mxu0 0
      %831 = vmatpush1.bf16.msra.mxu0 0
      %832 = vmatprep.mubr.bf16.mxu0 0
      %833 = vmatmul.mubr.bf16.gmra.mrb[0].mxu0 %v789
      %v834 = vpop.f32.mrb[0].mxu0
      %v835 = vadd.f32 %v775, %v834
      %v836 = vpop.f32.mrb[0].mxu0
      %v837 = vpop.f32.mrb[0].mxu0
      %v838 = vadd.f32 %v775, %v837
      %v839 = vpop.f32.mrb[0].mxu0
      %840 = vmatprep.mubr.bf16.mxu0 0
      %841 = vmatmul.mubr.bf16.gmra.mrb[0].mxu0 %v792
      %v842 = vpop.f32.mrb[0].mxu0
      %v843 = vadd.f32 %v775, %v842
      %v844 = vpop.f32.mrb[0].mxu0
      %v845 = vpop.f32.mrb[0].mxu0
      %v846 = vadd.f32 %v775, %v845
      %v847 = vpop.f32.mrb[0].mxu0
      %848 = vmatprep.mubr.bf16.mxu0 0
      %849 = vmatmul.mubr.bf16.gmra.mrb[0].mxu0 %v795
      %v850 = vpop.f32.mrb[0].mxu0
      %v851 = vadd.f32 %v775, %v850
      %v852 = vpop.f32.mrb[0].mxu0
      %v853 = vpop.f32.mrb[0].mxu0
      %v854 = vadd.f32 %v775, %v853
      %v855 = vpop.f32.mrb[0].mxu0
      %856 = vmatprep.mubr.bf16.mxu0 0
      %857 = vmatmul.mubr.bf16.gmra.mrb[0].mxu0 %v798
      %v858 = vpop.f32.mrb[0].mxu0
      %v859 = vadd.f32 %v775, %v858
      %v860 = vpop.f32.mrb[0].mxu0
      %v861 = vpop.f32.mrb[0].mxu0
      %v862 = vadd.f32 %v775, %v861
      %v863 = vpop.f32.mrb[0].mxu0
      %864 = vdwg.mxu0
      %s865 = scalar_lea.vmem %s2, 48
      %v866 = vld [vmem:[%s865] sm:$0xf]
      %v867 = vld [vmem:[%s865 + $0x4] sm:$0xf]
      %v868 = vld [vmem:[%s865 + $0x8] sm:$0xf]
      %v869 = vld [vmem:[%s865 + $0xc] sm:$0xf]
      %v870 = vlaneseq
      %v871 = vshrl.u32 %v870, 7
      %v872 = vsub.s32 5, %v871
      %v873 = vrot.slane %v297, %v872
      %v878 = vunpack.c.l.b16 %v866
      %v879 = vunpack.c.l.b16 %v867
      %v880 = vunpack.c.l.b16 %v868
      %v881 = vunpack.c.l.b16 %v869
      %v882 = vpack.c.b16 %v879, %v878
      %v883 = vpack.c.b16 %v881, %v880
      %886 = vmatprep.subr.bf16.mxu0 0
      %887 = vmatpush1.bf16.msra.mxu0 %v882
      %888 = vmatprep.subr.bf16.mxu0 0
      %889 = vmatpush1.bf16.msra.mxu0 %v883
      %890 = vmatprep.subr.bf16.mxu0 0
      %891 = vmatpush1.bf16.msra.mxu0 0
      %892 = vmatprep.subr.bf16.mxu0 0
      %893 = vmatpush1.bf16.msra.mxu0 0
      %894 = vmatprep.subr.bf16.mxu0 0
      %895 = vmatpush1.bf16.msra.mxu0 0
      %896 = vmatprep.subr.bf16.mxu0 0
      %897 = vmatpush1.bf16.msra.mxu0 0
      %898 = vmatprep.subr.bf16.mxu0 0
      %899 = vmatpush1.bf16.msra.mxu0 0
      %900 = vmatprep.subr.bf16.mxu0 0
      %901 = vmatpush1.bf16.msra.mxu0 0
      %902 = vmatprep.subr.bf16.mxu0 0
      %903 = vmatpush1.bf16.msra.mxu0 0
      %904 = vmatprep.subr.bf16.mxu0 0
      %905 = vmatpush1.bf16.msra.mxu0 0
      %906 = vmatprep.subr.bf16.mxu0 0
      %907 = vmatpush1.bf16.msra.mxu0 0
      %908 = vmatprep.subr.bf16.mxu0 0
      %909 = vmatpush1.bf16.msra.mxu0 0
      %910 = vmatprep.subr.bf16.mxu0 0
      %911 = vmatpush1.bf16.msra.mxu0 0
      %912 = vmatprep.subr.bf16.mxu0 0
      %913 = vmatpush1.bf16.msra.mxu0 0
      %914 = vmatprep.subr.bf16.mxu0 0
      %915 = vmatpush1.bf16.msra.mxu0 0
      %916 = vmatprep.subr.bf16.mxu0 0
      %917 = vmatpush1.bf16.msra.mxu0 0
      %918 = vmatprep.mubr.bf16.mxu0 0
      %919 = vmatmul.mubr.bf16.gmra.mrb[0].mxu0 %v789
      %v920 = vpop.f32.mrb[0].mxu0
      %v921 = vadd.f32 %v873, %v920
      %v922 = vpop.f32.mrb[0].mxu0
      %v923 = vpop.f32.mrb[0].mxu0
      %v924 = vadd.f32 %v873, %v923
      %v925 = vpop.f32.mrb[0].mxu0
      %926 = vmatprep.mubr.bf16.mxu0 0
      %927 = vmatmul.mubr.bf16.gmra.mrb[0].mxu0 %v792
      %v928 = vpop.f32.mrb[0].mxu0
      %v929 = vadd.f32 %v873, %v928
      %v930 = vpop.f32.mrb[0].mxu0
      %v931 = vpop.f32.mrb[0].mxu0
      %v932 = vadd.f32 %v873, %v931
      %v933 = vpop.f32.mrb[0].mxu0
      %934 = vmatprep.mubr.bf16.mxu0 0
      %935 = vmatmul.mubr.bf16.gmra.mrb[0].mxu0 %v795
      %v936 = vpop.f32.mrb[0].mxu0
      %v937 = vadd.f32 %v873, %v936
      %v938 = vpop.f32.mrb[0].mxu0
      %v939 = vpop.f32.mrb[0].mxu0
      %v940 = vadd.f32 %v873, %v939
      %v941 = vpop.f32.mrb[0].mxu0
      %942 = vmatprep.mubr.bf16.mxu0 0
      %943 = vmatmul.mubr.bf16.gmra.mrb[0].mxu0 %v798
      %v944 = vpop.f32.mrb[0].mxu0
      %v945 = vadd.f32 %v873, %v944
      %v946 = vpop.f32.mrb[0].mxu0
      %v947 = vpop.f32.mrb[0].mxu0
      %v948 = vadd.f32 %v873, %v947
      %v949 = vpop.f32.mrb[0].mxu0
      %950 = vdwg.mxu0
      %s951 = scalar_lea.vmem %s2, 64
      %v952 = vld [vmem:[%s951] sm:$0xf]
      %v953 = vld [vmem:[%s951 + $0x4] sm:$0xf]
      %v954 = vld [vmem:[%s951 + $0x8] sm:$0xf]
      %v955 = vld [vmem:[%s951 + $0xc] sm:$0xf]
      %v956 = vlaneseq
      %v957 = vshrl.u32 %v956, 7
      %v958 = vsub.s32 6, %v957
      %v959 = vrot.slane %v297, %v958
      %v964 = vunpack.c.l.b16 %v952
      %v965 = vunpack.c.l.b16 %v953
      %v966 = vunpack.c.l.b16 %v954
      %v967 = vunpack.c.l.b16 %v955
      %v968 = vpack.c.b16 %v965, %v964
      %v969 = vpack.c.b16 %v967, %v966
      %972 = vmatprep.subr.bf16.mxu0 0
      %973 = vmatpush1.bf16.msra.mxu0 %v968
      %974 = vmatprep.subr.bf16.mxu0 0
      %975 = vmatpush1.bf16.msra.mxu0 %v969
      %976 = vmatprep.subr.bf16.mxu0 0
      %977 = vmatpush1.bf16.msra.mxu0 0
      %978 = vmatprep.subr.bf16.mxu0 0
      %979 = vmatpush1.bf16.msra.mxu0 0
      %980 = vmatprep.subr.bf16.mxu0 0
      %981 = vmatpush1.bf16.msra.mxu0 0
      %982 = vmatprep.subr.bf16.mxu0 0
      %983 = vmatpush1.bf16.msra.mxu0 0
      %984 = vmatprep.subr.bf16.mxu0 0
      %985 = vmatpush1.bf16.msra.mxu0 0
      %986 = vmatprep.subr.bf16.mxu0 0
      %987 = vmatpush1.bf16.msra.mxu0 0
      %988 = vmatprep.subr.bf16.mxu0 0
      %989 = vmatpush1.bf16.msra.mxu0 0
      %990 = vmatprep.subr.bf16.mxu0 0
      %991 = vmatpush1.bf16.msra.mxu0 0
      %992 = vmatprep.subr.bf16.mxu0 0
      %993 = vmatpush1.bf16.msra.mxu0 0
      %994 = vmatprep.subr.bf16.mxu0 0
      %995 = vmatpush1.bf16.msra.mxu0 0
      %996 = vmatprep.subr.bf16.mxu0 0
      %997 = vmatpush1.bf16.msra.mxu0 0
      %998 = vmatprep.subr.bf16.mxu0 0
      %999 = vmatpush1.bf16.msra.mxu0 0
      %1000 = vmatprep.subr.bf16.mxu0 0
      %1001 = vmatpush1.bf16.msra.mxu0 0
      %1002 = vmatprep.subr.bf16.mxu0 0
      %1003 = vmatpush1.bf16.msra.mxu0 0
      %1004 = vmatprep.mubr.bf16.mxu0 0
      %1005 = vmatmul.mubr.bf16.gmra.mrb[0].mxu0 %v789
      %v1006 = vpop.f32.mrb[0].mxu0
      %v1007 = vadd.f32 %v959, %v1006
      %v1008 = vpop.f32.mrb[0].mxu0
      %v1009 = vpop.f32.mrb[0].mxu0
      %v1010 = vadd.f32 %v959, %v1009
      %v1011 = vpop.f32.mrb[0].mxu0
      %1012 = vmatprep.mubr.bf16.mxu0 0
      %1013 = vmatmul.mubr.bf16.gmra.mrb[0].mxu0 %v792
      %v1014 = vpop.f32.mrb[0].mxu0
      %v1015 = vadd.f32 %v959, %v1014
      %v1016 = vpop.f32.mrb[0].mxu0
      %v1017 = vpop.f32.mrb[0].mxu0
      %v1018 = vadd.f32 %v959, %v1017
      %v1019 = vpop.f32.mrb[0].mxu0
      %1020 = vmatprep.mubr.bf16.mxu0 0
      %1021 = vmatmul.mubr.bf16.gmra.mrb[0].mxu0 %v795
      %v1022 = vpop.f32.mrb[0].mxu0
      %v1023 = vadd.f32 %v959, %v1022
      %v1024 = vpop.f32.mrb[0].mxu0
      %v1025 = vpop.f32.mrb[0].mxu0
      %v1026 = vadd.f32 %v959, %v1025
      %v1027 = vpop.f32.mrb[0].mxu0
      %1028 = vmatprep.mubr.bf16.mxu0 0
      %1029 = vmatmul.mubr.bf16.gmra.mrb[0].mxu0 %v798
      %v1030 = vpop.f32.mrb[0].mxu0
      %v1031 = vadd.f32 %v959, %v1030
      %v1032 = vpop.f32.mrb[0].mxu0
      %v1033 = vpop.f32.mrb[0].mxu0
      %v1034 = vadd.f32 %v959, %v1033
      %v1035 = vpop.f32.mrb[0].mxu0
      %1036 = vdwg.mxu0
      %v1037 = vld [vmem:[%s4] sm:$0xf]
      %v1038 = vld [vmem:[%s4 + $0x4] sm:$0xf]
      %v1039 = vld [vmem:[%s4 + $0x8] sm:$0xf]
      %v1040 = vld [vmem:[%s4 + $0xc] sm:$0xf]
      %v1041 = vmul.f32 %v835, %v835
      %v1042 = vmul.f32 %v838, %v838
      %v1043 = vmul.f32 %v843, %v843
      %v1044 = vmul.f32 %v846, %v846
      %v1045 = vmul.f32 %v851, %v851
      %v1046 = vmul.f32 %v854, %v854
      %v1047 = vmul.f32 %v859, %v859
      %v1048 = vmul.f32 %v862, %v862
      %v1049 = vsel %vm401, %v1041, 0.0
      %1050 = vadd.xlane.f32.xlu0 %v1049
      %v1051 = vpop.xlane.xlu0 %1050
      %v1052 = vsel %vm401, %v1042, 0.0
      %1053 = vadd.xlane.f32.xlu0 %v1052
      %v1054 = vpop.xlane.xlu0 %1053
      %v1055 = vsel %vm401, %v1043, 0.0
      %1056 = vadd.xlane.f32.xlu0 %v1055
      %v1057 = vpop.xlane.xlu0 %1056
      %v1058 = vsel %vm401, %v1044, 0.0
      %1059 = vadd.xlane.f32.xlu0 %v1058
      %v1060 = vpop.xlane.xlu0 %1059
      %v1061 = vsel %vm401, %v1045, 0.0
      %1062 = vadd.xlane.f32.xlu0 %v1061
      %v1063 = vpop.xlane.xlu0 %1062
      %v1064 = vsel %vm401, %v1046, 0.0
      %1065 = vadd.xlane.f32.xlu0 %v1064
      %v1066 = vpop.xlane.xlu0 %1065
      %v1067 = vsel %vm401, %v1047, 0.0
      %1068 = vadd.xlane.f32.xlu0 %v1067
      %v1069 = vpop.xlane.xlu0 %1068
      %v1070 = vsel %vm401, %v1048, 0.0
      %1071 = vadd.xlane.f32.xlu0 %v1070
      %v1072 = vpop.xlane.xlu0 %1071
      %v1073 = vmul.f32 %v1051, 0.5
      %v1074 = vmul.f32 %v1054, 0.5
      %v1075 = vmul.f32 %v1057, 0.5
      %v1076 = vmul.f32 %v1060, 0.5
      %v1077 = vmul.f32 %v1063, 0.5
      %v1078 = vmul.f32 %v1066, 0.5
      %v1079 = vmul.f32 %v1069, 0.5
      %v1080 = vmul.f32 %v1072, 0.5
      %v1081 = vpack.c.bf16 %v838, %v835
      %v1082 = vpack.c.bf16 %v846, %v843
      %v1083 = vpack.c.bf16 %v854, %v851
      %v1084 = vpack.c.bf16 %v862, %v859
      %v1089 = vunpack.c.l.b16 %v1037
      %v1090 = vunpack.c.l.b16 %v1038
      %v1091 = vunpack.c.l.b16 %v1039
      %v1092 = vunpack.c.l.b16 %v1040
      %v1093 = vpack.c.b16 %v1090, %v1089
      %v1094 = vpack.c.b16 %v1092, %v1091
      %v1098 = vsel %vm401, %v1081, 0
      %v1101 = vsel %vm401, %v1082, 0
      %v1104 = vsel %vm401, %v1083, 0
      %v1107 = vsel %vm401, %v1084, 0
      %1109 = vmatprep.subr.bf16.mxu0 0
      %1110 = vmatpush1.bf16.msra.mxu0 %v1093
      %1111 = vmatprep.subr.bf16.mxu0 0
      %1112 = vmatpush1.bf16.msra.mxu0 %v1094
      %1113 = vmatprep.subr.bf16.mxu0 0
      %1114 = vmatpush1.bf16.msra.mxu0 0
      %1115 = vmatprep.subr.bf16.mxu0 0
      %1116 = vmatpush1.bf16.msra.mxu0 0
      %1117 = vmatprep.subr.bf16.mxu0 0
      %1118 = vmatpush1.bf16.msra.mxu0 0
      %1119 = vmatprep.subr.bf16.mxu0 0
      %1120 = vmatpush1.bf16.msra.mxu0 0
      %1121 = vmatprep.subr.bf16.mxu0 0
      %1122 = vmatpush1.bf16.msra.mxu0 0
      %1123 = vmatprep.subr.bf16.mxu0 0
      %1124 = vmatpush1.bf16.msra.mxu0 0
      %1125 = vmatprep.subr.bf16.mxu0 0
      %1126 = vmatpush1.bf16.msra.mxu0 0
      %1127 = vmatprep.subr.bf16.mxu0 0
      %1128 = vmatpush1.bf16.msra.mxu0 0
      %1129 = vmatprep.subr.bf16.mxu0 0
      %1130 = vmatpush1.bf16.msra.mxu0 0
      %1131 = vmatprep.subr.bf16.mxu0 0
      %1132 = vmatpush1.bf16.msra.mxu0 0
      %1133 = vmatprep.subr.bf16.mxu0 0
      %1134 = vmatpush1.bf16.msra.mxu0 0
      %1135 = vmatprep.subr.bf16.mxu0 0
      %1136 = vmatpush1.bf16.msra.mxu0 0
      %1137 = vmatprep.subr.bf16.mxu0 0
      %1138 = vmatpush1.bf16.msra.mxu0 0
      %1139 = vmatprep.subr.bf16.mxu0 0
      %1140 = vmatpush1.bf16.msra.mxu0 0
      %1141 = vmatprep.mubr.bf16.mxu0 0
      %1142 = vmatmul.mubr.bf16.gmra.mrb[0].mxu0 %v1098
      %v1143 = vpop.f32.mrb[0].mxu0
      %v1144 = vadd.f32 0.0, %v1143
      %v1145 = vpop.f32.mrb[0].mxu0
      %v1146 = vpop.f32.mrb[0].mxu0
      %v1147 = vadd.f32 0.0, %v1146
      %v1148 = vpop.f32.mrb[0].mxu0
      %1149 = vmatprep.mubr.bf16.mxu0 0
      %1150 = vmatmul.mubr.bf16.gmra.mrb[0].mxu0 %v1101
      %v1151 = vpop.f32.mrb[0].mxu0
      %v1152 = vadd.f32 0.0, %v1151
      %v1153 = vpop.f32.mrb[0].mxu0
      %v1154 = vpop.f32.mrb[0].mxu0
      %v1155 = vadd.f32 0.0, %v1154
      %v1156 = vpop.f32.mrb[0].mxu0
      %1157 = vmatprep.mubr.bf16.mxu0 0
      %1158 = vmatmul.mubr.bf16.gmra.mrb[0].mxu0 %v1104
      %v1159 = vpop.f32.mrb[0].mxu0
      %v1160 = vadd.f32 0.0, %v1159
      %v1161 = vpop.f32.mrb[0].mxu0
      %v1162 = vpop.f32.mrb[0].mxu0
      %v1163 = vadd.f32 0.0, %v1162
      %v1164 = vpop.f32.mrb[0].mxu0
      %1165 = vmatprep.mubr.bf16.mxu0 0
      %1166 = vmatmul.mubr.bf16.gmra.mrb[0].mxu0 %v1107
      %v1167 = vpop.f32.mrb[0].mxu0
      %v1168 = vadd.f32 0.0, %v1167
      %v1169 = vpop.f32.mrb[0].mxu0
      %v1170 = vpop.f32.mrb[0].mxu0
      %v1171 = vadd.f32 0.0, %v1170
      %v1172 = vpop.f32.mrb[0].mxu0
      %1173 = vdwg.mxu0
      %v1174 = vsub.f32 %v1144, %v1073
      %v1175 = vsub.f32 %v1147, %v1074
      %v1176 = vsub.f32 %v1152, %v1075
      %v1177 = vsub.f32 %v1155, %v1076
      %v1178 = vsub.f32 %v1160, %v1077
      %v1179 = vsub.f32 %v1163, %v1078
      %v1180 = vsub.f32 %v1168, %v1079
      %v1181 = vsub.f32 %v1171, %v1080
      %v1182 = vmul.f32 %v1174, 1.442695
      %v1183 = vpow.pop %v1182
      %v1184 = vmul.f32 %v1175, 1.442695
      %v1185 = vpow.pop %v1184
      %v1186 = vmul.f32 %v1176, 1.442695
      %v1187 = vpow.pop %v1186
      %v1188 = vmul.f32 %v1177, 1.442695
      %v1189 = vpow.pop %v1188
      %v1190 = vmul.f32 %v1178, 1.442695
      %v1191 = vpow.pop %v1190
      %v1192 = vmul.f32 %v1179, 1.442695
      %v1193 = vpow.pop %v1192
      %v1194 = vmul.f32 %v1180, 1.442695
      %v1195 = vpow.pop %v1194
      %v1196 = vmul.f32 %v1181, 1.442695
      %v1197 = vpow.pop %v1196
      %v1198 = vmul.f32 %v1183, 0.25
      %v1199 = vmul.f32 %v1185, 0.25
      %v1200 = vmul.f32 %v1187, 0.25
      %v1201 = vmul.f32 %v1189, 0.25
      %v1202 = vmul.f32 %v1191, 0.25
      %v1203 = vmul.f32 %v1193, 0.25
      %v1204 = vmul.f32 %v1195, 0.25
      %v1205 = vmul.f32 %v1197, 0.25
      %v1206 = vmul.f32 %v921, %v921
      %v1207 = vmul.f32 %v924, %v924
      %v1208 = vmul.f32 %v929, %v929
      %v1209 = vmul.f32 %v932, %v932
      %v1210 = vmul.f32 %v937, %v937
      %v1211 = vmul.f32 %v940, %v940
      %v1212 = vmul.f32 %v945, %v945
      %v1213 = vmul.f32 %v948, %v948
      %v1214 = vsel %vm401, %v1206, 0.0
      %1215 = vadd.xlane.f32.xlu0 %v1214
      %v1216 = vpop.xlane.xlu0 %1215
      %v1217 = vsel %vm401, %v1207, 0.0
      %1218 = vadd.xlane.f32.xlu0 %v1217
      %v1219 = vpop.xlane.xlu0 %1218
      %v1220 = vsel %vm401, %v1208, 0.0
      %1221 = vadd.xlane.f32.xlu0 %v1220
      %v1222 = vpop.xlane.xlu0 %1221
      %v1223 = vsel %vm401, %v1209, 0.0
      %1224 = vadd.xlane.f32.xlu0 %v1223
      %v1225 = vpop.xlane.xlu0 %1224
      %v1226 = vsel %vm401, %v1210, 0.0
      %1227 = vadd.xlane.f32.xlu0 %v1226
      %v1228 = vpop.xlane.xlu0 %1227
      %v1229 = vsel %vm401, %v1211, 0.0
      %1230 = vadd.xlane.f32.xlu0 %v1229
      %v1231 = vpop.xlane.xlu0 %1230
      %v1232 = vsel %vm401, %v1212, 0.0
      %1233 = vadd.xlane.f32.xlu0 %v1232
      %v1234 = vpop.xlane.xlu0 %1233
      %v1235 = vsel %vm401, %v1213, 0.0
      %1236 = vadd.xlane.f32.xlu0 %v1235
      %v1237 = vpop.xlane.xlu0 %1236
      %v1238 = vmul.f32 %v1216, 0.5
      %v1239 = vmul.f32 %v1219, 0.5
      %v1240 = vmul.f32 %v1222, 0.5
      %v1241 = vmul.f32 %v1225, 0.5
      %v1242 = vmul.f32 %v1228, 0.5
      %v1243 = vmul.f32 %v1231, 0.5
      %v1244 = vmul.f32 %v1234, 0.5
      %v1245 = vmul.f32 %v1237, 0.5
      %v1246 = vpack.c.bf16 %v924, %v921
      %v1247 = vpack.c.bf16 %v932, %v929
      %v1248 = vpack.c.bf16 %v940, %v937
      %v1249 = vpack.c.bf16 %v948, %v945
      %v1251 = vsel %vm401, %v1246, 0
      %v1254 = vsel %vm401, %v1247, 0
      %v1257 = vsel %vm401, %v1248, 0
      %v1260 = vsel %vm401, %v1249, 0
      %1262 = vmatprep.subr.bf16.mxu0 0
      %1263 = vmatpush1.bf16.msra.mxu0 %v1093
      %1264 = vmatprep.subr.bf16.mxu0 0
      %1265 = vmatpush1.bf16.msra.mxu0 %v1094
      %1266 = vmatprep.subr.bf16.mxu0 0
      %1267 = vmatpush1.bf16.msra.mxu0 0
      %1268 = vmatprep.subr.bf16.mxu0 0
      %1269 = vmatpush1.bf16.msra.mxu0 0
      %1270 = vmatprep.subr.bf16.mxu0 0
      %1271 = vmatpush1.bf16.msra.mxu0 0
      %1272 = vmatprep.subr.bf16.mxu0 0
      %1273 = vmatpush1.bf16.msra.mxu0 0
      %1274 = vmatprep.subr.bf16.mxu0 0
      %1275 = vmatpush1.bf16.msra.mxu0 0
      %1276 = vmatprep.subr.bf16.mxu0 0
      %1277 = vmatpush1.bf16.msra.mxu0 0
      %1278 = vmatprep.subr.bf16.mxu0 0
      %1279 = vmatpush1.bf16.msra.mxu0 0
      %1280 = vmatprep.subr.bf16.mxu0 0
      %1281 = vmatpush1.bf16.msra.mxu0 0
      %1282 = vmatprep.subr.bf16.mxu0 0
      %1283 = vmatpush1.bf16.msra.mxu0 0
      %1284 = vmatprep.subr.bf16.mxu0 0
      %1285 = vmatpush1.bf16.msra.mxu0 0
      %1286 = vmatprep.subr.bf16.mxu0 0
      %1287 = vmatpush1.bf16.msra.mxu0 0
      %1288 = vmatprep.subr.bf16.mxu0 0
      %1289 = vmatpush1.bf16.msra.mxu0 0
      %1290 = vmatprep.subr.bf16.mxu0 0
      %1291 = vmatpush1.bf16.msra.mxu0 0
      %1292 = vmatprep.subr.bf16.mxu0 0
      %1293 = vmatpush1.bf16.msra.mxu0 0
      %1294 = vmatprep.mubr.bf16.mxu0 0
      %1295 = vmatmul.mubr.bf16.gmra.mrb[0].mxu0 %v1251
      %v1296 = vpop.f32.mrb[0].mxu0
      %v1297 = vadd.f32 0.0, %v1296
      %v1298 = vpop.f32.mrb[0].mxu0
      %v1299 = vpop.f32.mrb[0].mxu0
      %v1300 = vadd.f32 0.0, %v1299
      %v1301 = vpop.f32.mrb[0].mxu0
      %1302 = vmatprep.mubr.bf16.mxu0 0
      %1303 = vmatmul.mubr.bf16.gmra.mrb[0].mxu0 %v1254
      %v1304 = vpop.f32.mrb[0].mxu0
      %v1305 = vadd.f32 0.0, %v1304
      %v1306 = vpop.f32.mrb[0].mxu0
      %v1307 = vpop.f32.mrb[0].mxu0
      %v1308 = vadd.f32 0.0, %v1307
      %v1309 = vpop.f32.mrb[0].mxu0
      %1310 = vmatprep.mubr.bf16.mxu0 0
      %1311 = vmatmul.mubr.bf16.gmra.mrb[0].mxu0 %v1257
      %v1312 = vpop.f32.mrb[0].mxu0
      %v1313 = vadd.f32 0.0, %v1312
      %v1314 = vpop.f32.mrb[0].mxu0
      %v1315 = vpop.f32.mrb[0].mxu0
      %v1316 = vadd.f32 0.0, %v1315
      %v1317 = vpop.f32.mrb[0].mxu0
      %1318 = vmatprep.mubr.bf16.mxu0 0
      %1319 = vmatmul.mubr.bf16.gmra.mrb[0].mxu0 %v1260
      %v1320 = vpop.f32.mrb[0].mxu0
      %v1321 = vadd.f32 0.0, %v1320
      %v1322 = vpop.f32.mrb[0].mxu0
      %v1323 = vpop.f32.mrb[0].mxu0
      %v1324 = vadd.f32 0.0, %v1323
      %v1325 = vpop.f32.mrb[0].mxu0
      %1326 = vdwg.mxu0
      %v1327 = vsub.f32 %v1297, %v1238
      %v1328 = vsub.f32 %v1300, %v1239
      %v1329 = vsub.f32 %v1305, %v1240
      %v1330 = vsub.f32 %v1308, %v1241
      %v1331 = vsub.f32 %v1313, %v1242
      %v1332 = vsub.f32 %v1316, %v1243
      %v1333 = vsub.f32 %v1321, %v1244
      %v1334 = vsub.f32 %v1324, %v1245
      %v1335 = vmul.f32 %v1327, 1.442695
      %v1336 = vpow.pop %v1335
      %v1337 = vmul.f32 %v1328, 1.442695
      %v1338 = vpow.pop %v1337
      %v1339 = vmul.f32 %v1329, 1.442695
      %v1340 = vpow.pop %v1339
      %v1341 = vmul.f32 %v1330, 1.442695
      %v1342 = vpow.pop %v1341
      %v1343 = vmul.f32 %v1331, 1.442695
      %v1344 = vpow.pop %v1343
      %v1345 = vmul.f32 %v1332, 1.442695
      %v1346 = vpow.pop %v1345
      %v1347 = vmul.f32 %v1333, 1.442695
      %v1348 = vpow.pop %v1347
      %v1349 = vmul.f32 %v1334, 1.442695
      %v1350 = vpow.pop %v1349
      %v1351 = vmul.f32 %v1336, 0.25
      %v1352 = vmul.f32 %v1338, 0.25
      %v1353 = vmul.f32 %v1340, 0.25
      %v1354 = vmul.f32 %v1342, 0.25
      %v1355 = vmul.f32 %v1344, 0.25
      %v1356 = vmul.f32 %v1346, 0.25
      %v1357 = vmul.f32 %v1348, 0.25
      %v1358 = vmul.f32 %v1350, 0.25
      %v1359 = vsel %vm311, %v1198, 0.0
      %v1360 = vsel %vm311, %v1199, 0.0
      %v1361 = vadd.f32 %v1359, %v1360
      %v1362 = vsel %vm311, %v1200, 0.0
      %v1363 = vadd.f32 %v1361, %v1362
      %v1364 = vsel %vm311, %v1201, 0.0
      %v1365 = vadd.f32 %v1363, %v1364
      %v1366 = vsel %vm311, %v1202, 0.0
      %v1367 = vadd.f32 %v1365, %v1366
      %v1368 = vsel %vm311, %v1203, 0.0
      %v1369 = vadd.f32 %v1367, %v1368
      %v1370 = vsel %vm311, %v1204, 0.0
      %v1371 = vadd.f32 %v1369, %v1370
      %v1372 = vsel %vm311, %v1205, 0.0
      %v1373 = vadd.f32 %v1371, %v1372
      %v1374 = vrot.slane %v1373, 4
      %v1375 = vadd.f32 %v1373, %v1374
      %v1376 = vrot.slane %v1375, 2
      %v1377 = vadd.f32 %v1375, %v1376
      %v1378 = vrot.slane %v1377, 1
      %v1379 = vadd.f32 %v1377, %v1378
      %v1380 = vmul.f32 %v1351, %v1379
      %v1381 = vmul.f32 %v1352, %v1379
      %v1382 = vmul.f32 %v1353, %v1379
      %v1383 = vmul.f32 %v1354, %v1379
      %v1384 = vmul.f32 %v1355, %v1379
      %v1385 = vmul.f32 %v1356, %v1379
      %v1386 = vmul.f32 %v1357, %v1379
      %v1387 = vmul.f32 %v1358, %v1379
      %v1388 = vsel %vm311, %v1380, 0.0
      %1389 = vadd.xlane.f32.xlu0 %v1388
      %v1390 = vpop.xlane.xlu0 %1389
      %v1391 = vsel %vm311, %v1381, 0.0
      %1392 = vadd.xlane.f32.xlu0 %v1391
      %v1393 = vpop.xlane.xlu0 %1392
      %v1394 = vsel %vm311, %v1382, 0.0
      %1395 = vadd.xlane.f32.xlu0 %v1394
      %v1396 = vpop.xlane.xlu0 %1395
      %v1397 = vsel %vm311, %v1383, 0.0
      %1398 = vadd.xlane.f32.xlu0 %v1397
      %v1399 = vpop.xlane.xlu0 %1398
      %v1400 = vsel %vm311, %v1384, 0.0
      %1401 = vadd.xlane.f32.xlu0 %v1400
      %v1402 = vpop.xlane.xlu0 %1401
      %v1403 = vsel %vm311, %v1385, 0.0
      %1404 = vadd.xlane.f32.xlu0 %v1403
      %v1405 = vpop.xlane.xlu0 %1404
      %v1406 = vsel %vm311, %v1386, 0.0
      %1407 = vadd.xlane.f32.xlu0 %v1406
      %v1408 = vpop.xlane.xlu0 %1407
      %v1409 = vsel %vm311, %v1387, 0.0
      %1410 = vadd.xlane.f32.xlu0 %v1409
      %v1411 = vpop.xlane.xlu0 %1410
      %v1412 = vpack.c.bf16 %v1010, %v1007
      %v1413 = vpack.c.bf16 %v1018, %v1015
      %v1414 = vpack.c.bf16 %v1026, %v1023
      %v1415 = vpack.c.bf16 %v1034, %v1031
      %v1416 = vpack.c.bf16 %v1199, %v1198
      %v1417 = vpack.c.bf16 %v1201, %v1200
      %v1418 = vpack.c.bf16 %v1203, %v1202
      %v1419 = vpack.c.bf16 %v1205, %v1204
      %1420 = vxpose.xlu0.c.b16.start [1/8] %v1412, 128
      %1421 = vxpose.xlu0.c.b16.cont [2/8] %v1413, 128
      %1422 = vxpose.xlu0.c.b16.cont [3/8] %v1414, 128
      %1423 = vxpose.xlu0.c.b16.cont [4/8] %v1415, 128
      %1424 = vxpose.xlu0.c.b16.cont [5/8] 0, 128
      %1425 = vxpose.xlu0.c.b16.cont [6/8] 0, 128
      %1426 = vxpose.xlu0.c.b16.cont [7/8] 0, 128
      %1427 = vxpose.xlu0.c.b16.end [8/8] 0, 128
      %v1428 = vpop.trf.xlu0
      %v1429 = vpop.trf.xlu0
      %v1430 = vpop.trf.xlu0
      %v1431 = vpop.trf.xlu0
      %v1432 = vpop.trf.xlu0
      %v1433 = vpop.trf.xlu0
      %v1434 = vpop.trf.xlu0
      %v1435 = vpop.trf.xlu0
      %vm1436 = vcmask 523264
      %v1438 = vsel %vm1436, %v1428, 0
      %v1441 = vsel %vm1436, %v1429, 0
      %1443 = vmatprep.subr.bf16.mxu0 0
      %1444 = vmatpush1.bf16.msra.mxu0 %v1416
      %1445 = vmatprep.subr.bf16.mxu0 0
      %1446 = vmatpush1.bf16.msra.mxu0 %v1417
      %1447 = vmatprep.subr.bf16.mxu0 0
      %1448 = vmatpush1.bf16.msra.mxu0 %v1418
      %1449 = vmatprep.subr.bf16.mxu0 0
      %1450 = vmatpush1.bf16.msra.mxu0 %v1419
      %1451 = vmatprep.subr.bf16.mxu0 0
      %1452 = vmatpush1.bf16.msra.mxu0 0
      %1453 = vmatprep.subr.bf16.mxu0 0
      %1454 = vmatpush1.bf16.msra.mxu0 0
      %1455 = vmatprep.subr.bf16.mxu0 0
      %1456 = vmatpush1.bf16.msra.mxu0 0
      %1457 = vmatprep.subr.bf16.mxu0 0
      %1458 = vmatpush1.bf16.msra.mxu0 0
      %1459 = vmatprep.subr.bf16.mxu0 0
      %1460 = vmatpush1.bf16.msra.mxu0 0
      %1461 = vmatprep.subr.bf16.mxu0 0
      %1462 = vmatpush1.bf16.msra.mxu0 0
      %1463 = vmatprep.subr.bf16.mxu0 0
      %1464 = vmatpush1.bf16.msra.mxu0 0
      %1465 = vmatprep.subr.bf16.mxu0 0
      %1466 = vmatpush1.bf16.msra.mxu0 0
      %1467 = vmatprep.subr.bf16.mxu0 0
      %1468 = vmatpush1.bf16.msra.mxu0 0
      %1469 = vmatprep.subr.bf16.mxu0 0
      %1470 = vmatpush1.bf16.msra.mxu0 0
      %1471 = vmatprep.subr.bf16.mxu0 0
      %1472 = vmatpush1.bf16.msra.mxu0 0
      %1473 = vmatprep.subr.bf16.mxu0 0
      %1474 = vmatpush1.bf16.msra.mxu0 0
      %1475 = vmatprep.mubr.bf16.mxu0 0
      %1476 = vmatmul.mubr.bf16.gmra.mrb[0].mxu0 %v1438
      %v1477 = vpop.f32.mrb[0].mxu0
      %v1478 = vadd.f32 0.0, %v1477
      %v1479 = vpop.f32.mrb[0].mxu0
      %v1480 = vpop.f32.mrb[0].mxu0
      %v1481 = vadd.f32 0.0, %v1480
      %v1482 = vpop.f32.mrb[0].mxu0
      %1483 = vmatprep.mubr.bf16.mxu0 0
      %1484 = vmatmul.mubr.bf16.gmra.mrb[0].mxu0 %v1441
      %v1485 = vpop.f32.mrb[0].mxu0
      %v1486 = vadd.f32 0.0, %v1485
      %v1487 = vpop.f32.mrb[0].mxu0
      %v1488 = vpop.f32.mrb[0].mxu0
      %v1489 = vadd.f32 0.0, %v1488
      %v1490 = vpop.f32.mrb[0].mxu0
      %1491 = vdwg.mxu0
      %v1492 = vpack.c.bf16 %v1352, %v1351
      %v1493 = vpack.c.bf16 %v1354, %v1353
      %v1494 = vpack.c.bf16 %v1356, %v1355
      %v1495 = vpack.c.bf16 %v1358, %v1357
      %v1496 = vpack.c.bf16 %v1481, %v1478
      %v1497 = vpack.c.bf16 %v1489, %v1486
      %v1499 = vsel %vm311, %v1492, 0
      %v1502 = vsel %vm311, %v1493, 0
      %v1505 = vsel %vm311, %v1494, 0
      %v1508 = vsel %vm311, %v1495, 0
      %v1511 = vsel %vm311, %v1496, 0
      %v1514 = vsel %vm311, %v1497, 0
      %1516 = vmatprep.subr.bf16.mxu0 0
      %1517 = vmatpush1.bf16.xpose.msra.mxu0 %v1511
      %1518 = vmatprep.subr.bf16.mxu0 0
      %1519 = vmatpush1.bf16.xpose.msra.mxu0 %v1514
      %1520 = vmatprep.subr.bf16.mxu0 0
      %1521 = vmatpush1.bf16.xpose.msra.mxu0 0
      %1522 = vmatprep.subr.bf16.mxu0 0
      %1523 = vmatpush1.bf16.xpose.msra.mxu0 0
      %1524 = vmatprep.subr.bf16.mxu0 0
      %1525 = vmatpush1.bf16.xpose.msra.mxu0 0
      %1526 = vmatprep.subr.bf16.mxu0 0
      %1527 = vmatpush1.bf16.xpose.msra.mxu0 0
      %1528 = vmatprep.subr.bf16.mxu0 0
      %1529 = vmatpush1.bf16.xpose.msra.mxu0 0
      %1530 = vmatprep.subr.bf16.mxu0 0
      %1531 = vmatpush1.bf16.xpose.msra.mxu0 0
      %1532 = vmatprep.subr.bf16.mxu0 0
      %1533 = vmatpush1.bf16.xpose.msra.mxu0 0
      %1534 = vmatprep.subr.bf16.mxu0 0
      %1535 = vmatpush1.bf16.xpose.msra.mxu0 0
      %1536 = vmatprep.subr.bf16.mxu0 0
      %1537 = vmatpush1.bf16.xpose.msra.mxu0 0
      %1538 = vmatprep.subr.bf16.mxu0 0
      %1539 = vmatpush1.bf16.xpose.msra.mxu0 0
      %1540 = vmatprep.subr.bf16.mxu0 0
      %1541 = vmatpush1.bf16.xpose.msra.mxu0 0
      %1542 = vmatprep.subr.bf16.mxu0 0
      %1543 = vmatpush1.bf16.xpose.msra.mxu0 0
      %1544 = vmatprep.subr.bf16.mxu0 0
      %1545 = vmatpush1.bf16.xpose.msra.mxu0 0
      %1546 = vmatprep.subr.bf16.mxu0 0
      %1547 = vmatpush1.bf16.xpose.msra.mxu0 0
      %1548 = vmatprep.mubr.bf16.mxu0 0
      %1549 = vmatmul.mubr.bf16.gmra.mrb[0].mxu0 %v1499
      %v1550 = vpop.f32.mrb[0].mxu0
      %v1551 = vadd.f32 0.0, %v1550
      %v1552 = vpop.f32.mrb[0].mxu0
      %v1553 = vpop.f32.mrb[0].mxu0
      %v1554 = vadd.f32 0.0, %v1553
      %v1555 = vpop.f32.mrb[0].mxu0
      %1556 = vmatprep.mubr.bf16.mxu0 0
      %1557 = vmatmul.mubr.bf16.gmra.mrb[0].mxu0 %v1502
      %v1558 = vpop.f32.mrb[0].mxu0
      %v1559 = vadd.f32 0.0, %v1558
      %v1560 = vpop.f32.mrb[0].mxu0
      %v1561 = vpop.f32.mrb[0].mxu0
      %v1562 = vadd.f32 0.0, %v1561
      %v1563 = vpop.f32.mrb[0].mxu0
      %1564 = vmatprep.mubr.bf16.mxu0 0
      %1565 = vmatmul.mubr.bf16.gmra.mrb[0].mxu0 %v1505
      %v1566 = vpop.f32.mrb[0].mxu0
      %v1567 = vadd.f32 0.0, %v1566
      %v1568 = vpop.f32.mrb[0].mxu0
      %v1569 = vpop.f32.mrb[0].mxu0
      %v1570 = vadd.f32 0.0, %v1569
      %v1571 = vpop.f32.mrb[0].mxu0
      %1572 = vmatprep.mubr.bf16.mxu0 0
      %1573 = vmatmul.mubr.bf16.gmra.mrb[0].mxu0 %v1508
      %v1574 = vpop.f32.mrb[0].mxu0
      %v1575 = vadd.f32 0.0, %v1574
      %v1576 = vpop.f32.mrb[0].mxu0
      %v1577 = vpop.f32.mrb[0].mxu0
      %v1578 = vadd.f32 0.0, %v1577
      %v1579 = vpop.f32.mrb[0].mxu0
      %1580 = vdwg.mxu0
      %v1581 = vadd.f32 %v1390, 1e-08
      %v1582 = vadd.f32 %v1393, 1e-08
      %v1583 = vadd.f32 %v1396, 1e-08
      %v1584 = vadd.f32 %v1399, 1e-08
      %v1585 = vadd.f32 %v1402, 1e-08
      %v1586 = vadd.f32 %v1405, 1e-08
      %v1587 = vadd.f32 %v1408, 1e-08
      %v1588 = vadd.f32 %v1411, 1e-08
      %v1589 = vrcp.pop %v1581
      %v1590 = vrcp.pop %v1582
      %v1591 = vrcp.pop %v1583
      %v1592 = vrcp.pop %v1584
      %v1593 = vrcp.pop %v1585
      %v1594 = vrcp.pop %v1586
      %v1595 = vrcp.pop %v1587
      %v1596 = vrcp.pop %v1588
      %v1597 = vmul.f32 %v1551, %v1589
      %v1598 = vmul.f32 %v1554, %v1590
      %v1599 = vmul.f32 %v1559, %v1591
      %v1600 = vmul.f32 %v1562, %v1592
      %v1601 = vmul.f32 %v1567, %v1593
      %v1602 = vmul.f32 %v1570, %v1594
      %v1603 = vmul.f32 %v1575, %v1595
      %v1604 = vmul.f32 %v1578, %v1596
      %v1605 = vpack.c.bf16 %v1598, %v1597
      %v1606 = vpack.c.bf16 %v1600, %v1599
      %v1607 = vpack.c.bf16 %v1602, %v1601
      %v1608 = vpack.c.bf16 %v1604, %v1603
      %s1609 = scalar_lea.vmem %s2, 80
      %v1610 = vld [vmem:[%s1609] sm:$0xf]
      %v1611 = vld [vmem:[%s1609 + $0x4] sm:$0xf]
      %v1612 = vld [vmem:[%s1609 + $0x8] sm:$0xf]
      %v1613 = vld [vmem:[%s1609 + $0xc] sm:$0xf]
      %v1614 = vlaneseq
      %v1615 = vshrl.u32 %v1614, 7
      %v1616 = vsub.s32 7, %v1615
      %v1617 = vrot.slane %v297, %v1616
      %v1622 = vunpack.c.l.b16 %v1610
      %v1623 = vunpack.c.l.b16 %v1611
      %v1624 = vunpack.c.l.b16 %v1612
      %v1625 = vunpack.c.l.b16 %v1613
      %v1626 = vpack.c.b16 %v1623, %v1622
      %v1627 = vpack.c.b16 %v1625, %v1624
      %v1631 = vsel %vm401, %v1605, 0
      %v1634 = vsel %vm401, %v1606, 0
      %v1637 = vsel %vm401, %v1607, 0
      %v1640 = vsel %vm401, %v1608, 0
      %1642 = vmatprep.subr.bf16.mxu0 0
      %1643 = vmatpush1.bf16.msra.mxu0 %v1626
      %1644 = vmatprep.subr.bf16.mxu0 0
      %1645 = vmatpush1.bf16.msra.mxu0 %v1627
      %1646 = vmatprep.subr.bf16.mxu0 0
      %1647 = vmatpush1.bf16.msra.mxu0 0
      %1648 = vmatprep.subr.bf16.mxu0 0
      %1649 = vmatpush1.bf16.msra.mxu0 0
      %1650 = vmatprep.subr.bf16.mxu0 0
      %1651 = vmatpush1.bf16.msra.mxu0 0
      %1652 = vmatprep.subr.bf16.mxu0 0
      %1653 = vmatpush1.bf16.msra.mxu0 0
      %1654 = vmatprep.subr.bf16.mxu0 0
      %1655 = vmatpush1.bf16.msra.mxu0 0
      %1656 = vmatprep.subr.bf16.mxu0 0
      %1657 = vmatpush1.bf16.msra.mxu0 0
      %1658 = vmatprep.subr.bf16.mxu0 0
      %1659 = vmatpush1.bf16.msra.mxu0 0
      %1660 = vmatprep.subr.bf16.mxu0 0
      %1661 = vmatpush1.bf16.msra.mxu0 0
      %1662 = vmatprep.subr.bf16.mxu0 0
      %1663 = vmatpush1.bf16.msra.mxu0 0
      %1664 = vmatprep.subr.bf16.mxu0 0
      %1665 = vmatpush1.bf16.msra.mxu0 0
      %1666 = vmatprep.subr.bf16.mxu0 0
      %1667 = vmatpush1.bf16.msra.mxu0 0
      %1668 = vmatprep.subr.bf16.mxu0 0
      %1669 = vmatpush1.bf16.msra.mxu0 0
      %1670 = vmatprep.subr.bf16.mxu0 0
      %1671 = vmatpush1.bf16.msra.mxu0 0
      %1672 = vmatprep.subr.bf16.mxu0 0
      %1673 = vmatpush1.bf16.msra.mxu0 0
      %1674 = vmatprep.mubr.bf16.mxu0 0
      %1675 = vmatmul.mubr.bf16.gmra.mrb[0].mxu0 %v1631
      %v1676 = vpop.f32.mrb[0].mxu0
      %v1677 = vadd.f32 %v1617, %v1676
      %v1678 = vpop.f32.mrb[0].mxu0
      %v1679 = vpop.f32.mrb[0].mxu0
      %v1680 = vadd.f32 %v1617, %v1679
      %v1681 = vpop.f32.mrb[0].mxu0
      %1682 = vmatprep.mubr.bf16.mxu0 0
      %1683 = vmatmul.mubr.bf16.gmra.mrb[0].mxu0 %v1634
      %v1684 = vpop.f32.mrb[0].mxu0
      %v1685 = vadd.f32 %v1617, %v1684
      %v1686 = vpop.f32.mrb[0].mxu0
      %v1687 = vpop.f32.mrb[0].mxu0
      %v1688 = vadd.f32 %v1617, %v1687
      %v1689 = vpop.f32.mrb[0].mxu0
      %1690 = vmatprep.mubr.bf16.mxu0 0
      %1691 = vmatmul.mubr.bf16.gmra.mrb[0].mxu0 %v1637
      %v1692 = vpop.f32.mrb[0].mxu0
      %v1693 = vadd.f32 %v1617, %v1692
      %v1694 = vpop.f32.mrb[0].mxu0
      %v1695 = vpop.f32.mrb[0].mxu0
      %v1696 = vadd.f32 %v1617, %v1695
      %v1697 = vpop.f32.mrb[0].mxu0
      %1698 = vmatprep.mubr.bf16.mxu0 0
      %1699 = vmatmul.mubr.bf16.gmra.mrb[0].mxu0 %v1640
      %v1700 = vpop.f32.mrb[0].mxu0
      %v1701 = vadd.f32 %v1617, %v1700
      %v1702 = vpop.f32.mrb[0].mxu0
      %v1703 = vpop.f32.mrb[0].mxu0
      %v1704 = vadd.f32 %v1617, %v1703
      %v1705 = vpop.f32.mrb[0].mxu0
      %1706 = vdwg.mxu0
      %v1707 = vadd.f32 %v604, %v1677
      %v1708 = vadd.f32 %v607, %v1680
      %v1709 = vadd.f32 %v612, %v1685
      %v1710 = vadd.f32 %v615, %v1688
      %v1711 = vadd.f32 %v620, %v1693
      %v1712 = vadd.f32 %v623, %v1696
      %v1713 = vadd.f32 %v628, %v1701
      %v1714 = vadd.f32 %v631, %v1704
      %v1715 = vsel %vm401, %v1707, 0.0
      %1716 = vadd.xlane.f32.xlu0 %v1715
      %v1717 = vpop.xlane.xlu0 %1716
      %v1718 = vsel %vm401, %v1708, 0.0
      %1719 = vadd.xlane.f32.xlu0 %v1718
      %v1720 = vpop.xlane.xlu0 %1719
      %v1721 = vsel %vm401, %v1709, 0.0
      %1722 = vadd.xlane.f32.xlu0 %v1721
      %v1723 = vpop.xlane.xlu0 %1722
      %v1724 = vsel %vm401, %v1710, 0.0
      %1725 = vadd.xlane.f32.xlu0 %v1724
      %v1726 = vpop.xlane.xlu0 %1725
      %v1727 = vsel %vm401, %v1711, 0.0
      %1728 = vadd.xlane.f32.xlu0 %v1727
      %v1729 = vpop.xlane.xlu0 %1728
      %v1730 = vsel %vm401, %v1712, 0.0
      %1731 = vadd.xlane.f32.xlu0 %v1730
      %v1732 = vpop.xlane.xlu0 %1731
      %v1733 = vsel %vm401, %v1713, 0.0
      %1734 = vadd.xlane.f32.xlu0 %v1733
      %v1735 = vpop.xlane.xlu0 %1734
      %v1736 = vsel %vm401, %v1714, 0.0
      %1737 = vadd.xlane.f32.xlu0 %v1736
      %v1738 = vpop.xlane.xlu0 %1737
      %v1739 = vmul.f32 %v1717, %v658
      %v1740 = vmul.f32 %v1720, %v658
      %v1741 = vmul.f32 %v1723, %v658
      %v1742 = vmul.f32 %v1726, %v658
      %v1743 = vmul.f32 %v1729, %v658
      %v1744 = vmul.f32 %v1732, %v658
      %v1745 = vmul.f32 %v1735, %v658
      %v1746 = vmul.f32 %v1738, %v658
      %v1747 = vsub.f32 %v1707, %v1739
      %v1748 = vsub.f32 %v1708, %v1740
      %v1749 = vsub.f32 %v1709, %v1741
      %v1750 = vsub.f32 %v1710, %v1742
      %v1751 = vsub.f32 %v1711, %v1743
      %v1752 = vsub.f32 %v1712, %v1744
      %v1753 = vsub.f32 %v1713, %v1745
      %v1754 = vsub.f32 %v1714, %v1746
      %v1755 = vmul.f32 %v1747, %v1747
      %v1756 = vmul.f32 %v1748, %v1748
      %v1757 = vmul.f32 %v1749, %v1749
      %v1758 = vmul.f32 %v1750, %v1750
      %v1759 = vmul.f32 %v1751, %v1751
      %v1760 = vmul.f32 %v1752, %v1752
      %v1761 = vmul.f32 %v1753, %v1753
      %v1762 = vmul.f32 %v1754, %v1754
      %v1763 = vsel %vm401, %v1755, 0.0
      %1764 = vadd.xlane.f32.xlu0 %v1763
      %v1765 = vpop.xlane.xlu0 %1764
      %v1766 = vsel %vm401, %v1756, 0.0
      %1767 = vadd.xlane.f32.xlu0 %v1766
      %v1768 = vpop.xlane.xlu0 %1767
      %v1769 = vsel %vm401, %v1757, 0.0
      %1770 = vadd.xlane.f32.xlu0 %v1769
      %v1771 = vpop.xlane.xlu0 %1770
      %v1772 = vsel %vm401, %v1758, 0.0
      %1773 = vadd.xlane.f32.xlu0 %v1772
      %v1774 = vpop.xlane.xlu0 %1773
      %v1775 = vsel %vm401, %v1759, 0.0
      %1776 = vadd.xlane.f32.xlu0 %v1775
      %v1777 = vpop.xlane.xlu0 %1776
      %v1778 = vsel %vm401, %v1760, 0.0
      %1779 = vadd.xlane.f32.xlu0 %v1778
      %v1780 = vpop.xlane.xlu0 %1779
      %v1781 = vsel %vm401, %v1761, 0.0
      %1782 = vadd.xlane.f32.xlu0 %v1781
      %v1783 = vpop.xlane.xlu0 %1782
      %v1784 = vsel %vm401, %v1762, 0.0
      %1785 = vadd.xlane.f32.xlu0 %v1784
      %v1786 = vpop.xlane.xlu0 %1785
      %v1787 = vmul.f32 %v1765, %v658
      %v1788 = vmul.f32 %v1768, %v658
      %v1789 = vmul.f32 %v1771, %v658
      %v1790 = vmul.f32 %v1774, %v658
      %v1791 = vmul.f32 %v1777, %v658
      %v1792 = vmul.f32 %v1780, %v658
      %v1793 = vmul.f32 %v1783, %v658
      %v1794 = vmul.f32 %v1786, %v658
      %v1795 = vadd.f32 %v1787, 1e-05
      %v1796 = vadd.f32 %v1788, 1e-05
      %v1797 = vadd.f32 %v1789, 1e-05
      %v1798 = vadd.f32 %v1790, 1e-05
      %v1799 = vadd.f32 %v1791, 1e-05
      %v1800 = vadd.f32 %v1792, 1e-05
      %v1801 = vadd.f32 %v1793, 1e-05
      %v1802 = vadd.f32 %v1794, 1e-05
      %v1803 = vrsqrt.pop %v1795
      %v1804 = vrsqrt.pop %v1796
      %v1805 = vrsqrt.pop %v1797
      %v1806 = vrsqrt.pop %v1798
      %v1807 = vrsqrt.pop %v1799
      %v1808 = vrsqrt.pop %v1800
      %v1809 = vrsqrt.pop %v1801
      %v1810 = vrsqrt.pop %v1802
      %v1811 = vmul.f32 %v1747, %v1803
      %v1812 = vmul.f32 %v1748, %v1804
      %v1813 = vmul.f32 %v1749, %v1805
      %v1814 = vmul.f32 %v1750, %v1806
      %v1815 = vmul.f32 %v1751, %v1807
      %v1816 = vmul.f32 %v1752, %v1808
      %v1817 = vmul.f32 %v1753, %v1809
      %v1818 = vmul.f32 %v1754, %v1810
      %v1819 = vlaneseq
      %v1820 = vshrl.u32 %v1819, 7
      %v1821 = vsub.s32 0, %v1820
      %v1822 = vrot.slane %v298, %v1821
      %v1823 = vmul.f32 %v1811, %v1822
      %v1824 = vmul.f32 %v1812, %v1822
      %v1825 = vmul.f32 %v1813, %v1822
      %v1826 = vmul.f32 %v1814, %v1822
      %v1827 = vmul.f32 %v1815, %v1822
      %v1828 = vmul.f32 %v1816, %v1822
      %v1829 = vmul.f32 %v1817, %v1822
      %v1830 = vmul.f32 %v1818, %v1822
      %v1831 = vlaneseq
      %v1832 = vshrl.u32 %v1831, 7
      %v1833 = vsub.s32 1, %v1832
      %v1834 = vrot.slane %v298, %v1833
      %v1835 = vadd.f32 %v1823, %v1834
      %v1836 = vadd.f32 %v1824, %v1834
      %v1837 = vadd.f32 %v1825, %v1834
      %v1838 = vadd.f32 %v1826, %v1834
      %v1839 = vadd.f32 %v1827, %v1834
      %v1840 = vadd.f32 %v1828, %v1834
      %v1841 = vadd.f32 %v1829, %v1834
      %v1842 = vadd.f32 %v1830, %v1834
      %v1843 = vpack.c.bf16 %v1836, %v1835
      %v1844 = vpack.c.bf16 %v1838, %v1837
      %v1845 = vpack.c.bf16 %v1840, %v1839
      %v1846 = vpack.c.bf16 %v1842, %v1841
      %s1847 = scalar_lea.vmem %s2, 96
      %v1848 = vld [vmem:[%s1847] sm:$0xf]
      %v1849 = vld [vmem:[%s1847 + $0x4] sm:$0xf]
      %v1850 = vld [vmem:[%s1847 + $0x8] sm:$0xf]
      %v1851 = vld [vmem:[%s1847 + $0xc] sm:$0xf]
      %v1852 = vlaneseq
      %v1853 = vshrl.u32 %v1852, 7
      %v1854 = vsub.s32 2, %v1853
      %v1855 = vrot.slane %v298, %v1854
      %v1860 = vunpack.c.l.b16 %v1848
      %v1861 = vunpack.c.l.b16 %v1849
      %v1862 = vunpack.c.l.b16 %v1850
      %v1863 = vunpack.c.l.b16 %v1851
      %v1864 = vpack.c.b16 %v1861, %v1860
      %v1865 = vpack.c.b16 %v1863, %v1862
      %v1869 = vsel %vm401, %v1843, 0
      %v1872 = vsel %vm401, %v1844, 0
      %v1875 = vsel %vm401, %v1845, 0
      %v1878 = vsel %vm401, %v1846, 0
      %1880 = vmatprep.subr.bf16.mxu0 0
      %1881 = vmatpush1.bf16.msra.mxu0 %v1864
      %1882 = vmatprep.subr.bf16.mxu0 0
      %1883 = vmatpush1.bf16.msra.mxu0 %v1865
      %1884 = vmatprep.subr.bf16.mxu0 0
      %1885 = vmatpush1.bf16.msra.mxu0 0
      %1886 = vmatprep.subr.bf16.mxu0 0
      %1887 = vmatpush1.bf16.msra.mxu0 0
      %1888 = vmatprep.subr.bf16.mxu0 0
      %1889 = vmatpush1.bf16.msra.mxu0 0
      %1890 = vmatprep.subr.bf16.mxu0 0
      %1891 = vmatpush1.bf16.msra.mxu0 0
      %1892 = vmatprep.subr.bf16.mxu0 0
      %1893 = vmatpush1.bf16.msra.mxu0 0
      %1894 = vmatprep.subr.bf16.mxu0 0
      %1895 = vmatpush1.bf16.msra.mxu0 0
      %1896 = vmatprep.subr.bf16.mxu0 0
      %1897 = vmatpush1.bf16.msra.mxu0 0
      %1898 = vmatprep.subr.bf16.mxu0 0
      %1899 = vmatpush1.bf16.msra.mxu0 0
      %1900 = vmatprep.subr.bf16.mxu0 0
      %1901 = vmatpush1.bf16.msra.mxu0 0
      %1902 = vmatprep.subr.bf16.mxu0 0
      %1903 = vmatpush1.bf16.msra.mxu0 0
      %1904 = vmatprep.subr.bf16.mxu0 0
      %1905 = vmatpush1.bf16.msra.mxu0 0
      %1906 = vmatprep.subr.bf16.mxu0 0
      %1907 = vmatpush1.bf16.msra.mxu0 0
      %1908 = vmatprep.subr.bf16.mxu0 0
      %1909 = vmatpush1.bf16.msra.mxu0 0
      %1910 = vmatprep.subr.bf16.mxu0 0
      %1911 = vmatpush1.bf16.msra.mxu0 0
      %1912 = vmatprep.mubr.bf16.mxu0 0
      %1913 = vmatmul.mubr.bf16.gmra.mrb[0].mxu0 %v1869
      %v1914 = vpop.f32.mrb[0].mxu0
      %v1915 = vadd.f32 %v1855, %v1914
      %v1916 = vpop.f32.mrb[0].mxu0
      %v1917 = vpop.f32.mrb[0].mxu0
      %v1918 = vadd.f32 %v1855, %v1917
      %v1919 = vpop.f32.mrb[0].mxu0
      %1920 = vmatprep.mubr.bf16.mxu0 0
      %1921 = vmatmul.mubr.bf16.gmra.mrb[0].mxu0 %v1872
      %v1922 = vpop.f32.mrb[0].mxu0
      %v1923 = vadd.f32 %v1855, %v1922
      %v1924 = vpop.f32.mrb[0].mxu0
      %v1925 = vpop.f32.mrb[0].mxu0
      %v1926 = vadd.f32 %v1855, %v1925
      %v1927 = vpop.f32.mrb[0].mxu0
      %1928 = vmatprep.mubr.bf16.mxu0 0
      %1929 = vmatmul.mubr.bf16.gmra.mrb[0].mxu0 %v1875
      %v1930 = vpop.f32.mrb[0].mxu0
      %v1931 = vadd.f32 %v1855, %v1930
      %v1932 = vpop.f32.mrb[0].mxu0
      %v1933 = vpop.f32.mrb[0].mxu0
      %v1934 = vadd.f32 %v1855, %v1933
      %v1935 = vpop.f32.mrb[0].mxu0
      %1936 = vmatprep.mubr.bf16.mxu0 0
      %1937 = vmatmul.mubr.bf16.gmra.mrb[0].mxu0 %v1878
      %v1938 = vpop.f32.mrb[0].mxu0
      %v1939 = vadd.f32 %v1855, %v1938
      %v1940 = vpop.f32.mrb[0].mxu0
      %v1941 = vpop.f32.mrb[0].mxu0
      %v1942 = vadd.f32 %v1855, %v1941
      %v1943 = vpop.f32.mrb[0].mxu0
      %1944 = vdwg.mxu0
      %v1945 = vmul.f32 %v1915, 0.5
      %v1946 = vmul.f32 %v1918, 0.5
      %v1947 = vmul.f32 %v1923, 0.5
      %v1948 = vmul.f32 %v1926, 0.5
      %v1949 = vmul.f32 %v1931, 0.5
      %v1950 = vmul.f32 %v1934, 0.5
      %v1951 = vmul.f32 %v1939, 0.5
      %v1952 = vmul.f32 %v1942, 0.5
      %v1953 = vmul.f32 %v1915, %v499
      %v1954 = vmul.f32 %v1918, %v499
      %v1955 = vmul.f32 %v1923, %v499
      %v1956 = vmul.f32 %v1926, %v499
      %v1957 = vmul.f32 %v1931, %v499
      %v1958 = vmul.f32 %v1934, %v499
      %v1959 = vmul.f32 %v1939, %v499
      %v1960 = vmul.f32 %v1942, %v499
      %v1961 = verf.f32.pop %v1953
      %v1962 = verf.f32.pop %v1954
      %v1963 = verf.f32.pop %v1955
      %v1964 = verf.f32.pop %v1956
      %v1965 = verf.f32.pop %v1957
      %v1966 = verf.f32.pop %v1958
      %v1967 = verf.f32.pop %v1959
      %v1968 = verf.f32.pop %v1960
      %v1969 = vadd.f32 %v1961, 1.0
      %v1970 = vadd.f32 %v1962, 1.0
      %v1971 = vadd.f32 %v1963, 1.0
      %v1972 = vadd.f32 %v1964, 1.0
      %v1973 = vadd.f32 %v1965, 1.0
      %v1974 = vadd.f32 %v1966, 1.0
      %v1975 = vadd.f32 %v1967, 1.0
      %v1976 = vadd.f32 %v1968, 1.0
      %v1977 = vmul.f32 %v1945, %v1969
      %v1978 = vmul.f32 %v1946, %v1970
      %v1979 = vmul.f32 %v1947, %v1971
      %v1980 = vmul.f32 %v1948, %v1972
      %v1981 = vmul.f32 %v1949, %v1973
      %v1982 = vmul.f32 %v1950, %v1974
      %v1983 = vmul.f32 %v1951, %v1975
      %v1984 = vmul.f32 %v1952, %v1976
      %v1985 = vpack.c.bf16 %v1978, %v1977
      %v1986 = vpack.c.bf16 %v1980, %v1979
      %v1987 = vpack.c.bf16 %v1982, %v1981
      %v1988 = vpack.c.bf16 %v1984, %v1983
      %s1989 = scalar_lea.vmem %s2, 112
      %v1990 = vld [vmem:[%s1989] sm:$0xf]
      %v1991 = vld [vmem:[%s1989 + $0x4] sm:$0xf]
      %v1992 = vld [vmem:[%s1989 + $0x8] sm:$0xf]
      %v1993 = vld [vmem:[%s1989 + $0xc] sm:$0xf]
      %v1994 = vlaneseq
      %v1995 = vshrl.u32 %v1994, 7
      %v1996 = vsub.s32 3, %v1995
      %v1997 = vrot.slane %v298, %v1996
      %v2002 = vunpack.c.l.b16 %v1990
      %v2003 = vunpack.c.l.b16 %v1991
      %v2004 = vunpack.c.l.b16 %v1992
      %v2005 = vunpack.c.l.b16 %v1993
      %v2006 = vpack.c.b16 %v2003, %v2002
      %v2007 = vpack.c.b16 %v2005, %v2004
      %v2011 = vsel %vm401, %v1985, 0
      %v2014 = vsel %vm401, %v1986, 0
      %v2017 = vsel %vm401, %v1987, 0
      %v2020 = vsel %vm401, %v1988, 0
      %2022 = vmatprep.subr.bf16.mxu0 0
      %2023 = vmatpush1.bf16.msra.mxu0 %v2006
      %2024 = vmatprep.subr.bf16.mxu0 0
      %2025 = vmatpush1.bf16.msra.mxu0 %v2007
      %2026 = vmatprep.subr.bf16.mxu0 0
      %2027 = vmatpush1.bf16.msra.mxu0 0
      %2028 = vmatprep.subr.bf16.mxu0 0
      %2029 = vmatpush1.bf16.msra.mxu0 0
      %2030 = vmatprep.subr.bf16.mxu0 0
      %2031 = vmatpush1.bf16.msra.mxu0 0
      %2032 = vmatprep.subr.bf16.mxu0 0
      %2033 = vmatpush1.bf16.msra.mxu0 0
      %2034 = vmatprep.subr.bf16.mxu0 0
      %2035 = vmatpush1.bf16.msra.mxu0 0
      %2036 = vmatprep.subr.bf16.mxu0 0
      %2037 = vmatpush1.bf16.msra.mxu0 0
      %2038 = vmatprep.subr.bf16.mxu0 0
      %2039 = vmatpush1.bf16.msra.mxu0 0
      %2040 = vmatprep.subr.bf16.mxu0 0
      %2041 = vmatpush1.bf16.msra.mxu0 0
      %2042 = vmatprep.subr.bf16.mxu0 0
      %2043 = vmatpush1.bf16.msra.mxu0 0
      %2044 = vmatprep.subr.bf16.mxu0 0
      %2045 = vmatpush1.bf16.msra.mxu0 0
      %2046 = vmatprep.subr.bf16.mxu0 0
      %2047 = vmatpush1.bf16.msra.mxu0 0
      %2048 = vmatprep.subr.bf16.mxu0 0
      %2049 = vmatpush1.bf16.msra.mxu0 0
      %2050 = vmatprep.subr.bf16.mxu0 0
      %2051 = vmatpush1.bf16.msra.mxu0 0
      %2052 = vmatprep.subr.bf16.mxu0 0
      %2053 = vmatpush1.bf16.msra.mxu0 0
      %2054 = vmatprep.mubr.bf16.mxu0 0
      %2055 = vmatmul.mubr.bf16.gmra.mrb[0].mxu0 %v2011
      %v2056 = vpop.f32.mrb[0].mxu0
      %v2057 = vadd.f32 %v1997, %v2056
      %v2058 = vpop.f32.mrb[0].mxu0
      %v2059 = vpop.f32.mrb[0].mxu0
      %v2060 = vadd.f32 %v1997, %v2059
      %v2061 = vpop.f32.mrb[0].mxu0
      %2062 = vmatprep.mubr.bf16.mxu0 0
      %2063 = vmatmul.mubr.bf16.gmra.mrb[0].mxu0 %v2014
      %v2064 = vpop.f32.mrb[0].mxu0
      %v2065 = vadd.f32 %v1997, %v2064
      %v2066 = vpop.f32.mrb[0].mxu0
      %v2067 = vpop.f32.mrb[0].mxu0
      %v2068 = vadd.f32 %v1997, %v2067
      %v2069 = vpop.f32.mrb[0].mxu0
      %2070 = vmatprep.mubr.bf16.mxu0 0
      %2071 = vmatmul.mubr.bf16.gmra.mrb[0].mxu0 %v2017
      %v2072 = vpop.f32.mrb[0].mxu0
      %v2073 = vadd.f32 %v1997, %v2072
      %v2074 = vpop.f32.mrb[0].mxu0
      %v2075 = vpop.f32.mrb[0].mxu0
      %v2076 = vadd.f32 %v1997, %v2075
      %v2077 = vpop.f32.mrb[0].mxu0
      %2078 = vmatprep.mubr.bf16.mxu0 0
      %2079 = vmatmul.mubr.bf16.gmra.mrb[0].mxu0 %v2020
      %v2080 = vpop.f32.mrb[0].mxu0
      %v2081 = vadd.f32 %v1997, %v2080
      %v2082 = vpop.f32.mrb[0].mxu0
      %v2083 = vpop.f32.mrb[0].mxu0
      %v2084 = vadd.f32 %v1997, %v2083
      %v2085 = vpop.f32.mrb[0].mxu0
      %2086 = vdwg.mxu0
      %v2087 = vadd.f32 %v1707, %v2057
      %v2088 = vadd.f32 %v1708, %v2060
      %v2089 = vadd.f32 %v1709, %v2065
      %v2090 = vadd.f32 %v1710, %v2068
      %v2091 = vadd.f32 %v1711, %v2073
      %v2092 = vadd.f32 %v1712, %v2076
      %v2093 = vadd.f32 %v1713, %v2081
      %v2094 = vadd.f32 %v1714, %v2084
      %v2095 = vpack.c.bf16 %v2088, %v2087
      %v2096 = vpack.c.bf16 %v2090, %v2089
      %v2097 = vpack.c.bf16 %v2092, %v2091
      %v2098 = vpack.c.bf16 %v2094, %v2093
      %v2103 = vunpack.c.l.b16 %v2095
      %v2104 = vunpack.c.h.b16 %v2095
      %v2105 = vunpack.c.l.b16 %v2096
      %v2106 = vunpack.c.h.b16 %v2096
      %v2107 = vunpack.c.l.b16 %v2097
      %v2108 = vunpack.c.h.b16 %v2097
      %v2109 = vunpack.c.l.b16 %v2098
      %v2110 = vunpack.c.h.b16 %v2098
      %v2111 = vpack.c.b16 %v2103, %v2103
      %v2112 = vpack.c.b16 %v2104, %v2104
      %v2113 = vpack.c.b16 %v2105, %v2105
      %v2114 = vpack.c.b16 %v2106, %v2106
      %v2115 = vpack.c.b16 %v2107, %v2107
      %v2116 = vpack.c.b16 %v2108, %v2108
      %v2117 = vpack.c.b16 %v2109, %v2109
      %v2118 = vpack.c.b16 %v2110, %v2110
      %vm2127 = vcmask 257024
      %2128 = vst.msk [vmem:[%s271] sm:$0xf] %vm2127, %v2111
      %2129 = vst.msk [vmem:[%s271 + $0x4] sm:$0xf] %vm2127, %v2112
      %2130 = vst.msk [vmem:[%s271 + $0x8] sm:$0xf] %vm2127, %v2113
      %2131 = vst.msk [vmem:[%s271 + $0xc] sm:$0xf] %vm2127, %v2114
      %2132 = vst.msk [vmem:[%s271 + $0x10] sm:$0xf] %vm2127, %v2115
      %2133 = vst.msk [vmem:[%s271 + $0x14] sm:$0xf] %vm2127, %v2116
      %2134 = vst.msk [vmem:[%s271 + $0x18] sm:$0xf] %vm2127, %v2117
      %2135 = vst.msk [vmem:[%s271 + $0x1c] sm:$0xf] %vm2127, %v2118
      %p2136 = scmp.lt.s32.totalorder %s17, 1
      %s2137 = scalar_select %p2136, %s17, 1
      %s2138 = smul.addr %s2137, 8
      %s2139 = smul.addr %s2138, 4
      %s2140 = scalar_lea.vmem %s6, %s2139
      // Predicated region
      $region45: #{tpu_custom_call.1} parent=43 // pred_check
        %p2141 = pneg %p171
      $region46: #{tpu_custom_call.1} parent=43 // pred_check_branch
        %2143 = sbr.rel (%p2141) target = $region48
      $region47: #{tpu_custom_call.1} parent=43 // pred_region
        _
      $region48: #{tpu_custom_call.1} parent=43 // pred_fallthru
        _
    $region44: #{tpu_custom_call.1} parent=5 // pred_fallthru
      _
    %p2144 = scmp.le.s32.totalorder 2, %s12
    // Predicated region
    $region49: #{tpu_custom_call.1} parent=5 // pred_check
      %p2145 = pneg %p2144
    $region50: #{tpu_custom_call.1} parent=5 // pred_check_branch
      %2147 = sbr.rel (%p2145) target = $region52
    $region51: #{tpu_custom_call.1} parent=5 // pred_region
      %s2148 = ssub.s32 %s12, 2
      // Predicated region
      $region53: #{tpu_custom_call.1} parent=51 // pred_check
        %p2149 = pneg %p177
      $region54: #{tpu_custom_call.1} parent=51 // pred_check_branch
        %2151 = sbr.rel (%p2149) target = $region56
      $region55: #{tpu_custom_call.1} parent=51 // pred_region
        %p2152 = scmp.lt.s32.totalorder %s18, 1
        %s2153 = scalar_select %p2152, %s18, 1
        %s2154 = smul.addr %s2153, 8
        %s2155 = smul.addr %s2154, 4
        %s2156 = scalar_lea.vmem %s6, %s2155
      $region56: #{tpu_custom_call.1} parent=51 // pred_fallthru
        _
    $region52: #{tpu_custom_call.1} parent=5 // pred_fallthru
      _
  $region6: #{tpu_custom_call.1} parent=0 // loop_footer
    %s16 = sadd.s32 1, %s12
  $region7: #{tpu_custom_call.1} parent=0 // loop_footer_branch
    %11 = sbr.rel target = $region3
  $region8: #{tpu_custom_call.1} parent=0 // loop_exit
    _

</llo_original>
